<compile_context>
chip_gen: v6e
topology: v6e:2x2x1
jax: 0.10.0
libtpu: 0.0.40
codegen_flags: <defaults>
</compile_context>

<pallas_src>
import functools
import math

import jax
import jax.numpy as jnp
from jax.experimental import pallas as pl
from jax.experimental.pallas import tpu as pltpu


def _round_up(a, b):
    return ((a + b - 1) // b) * b


def equal_conv2d_kernel(w_ref, b_ref, x_lo_ref, x_hi_ref, o_ref, x2_ref, *,
                        offsets, tm, scale):
    # w_ref : (kH*kW, C_out_p, C_in_p)  resident weight taps
    # b_ref : (C_out_p, 1)              resident bias
    # x_lo  : (C_in_p, tm)              flat-spatial tile i
    # x_hi  : (C_in_p, tm)              flat-spatial tile i+1 (halo)
    # o_ref : (C_out_p, tm)             lane-dense output tile
    # x2_ref: (C_in_p, 2*tm)            VMEM scratch: [tile i | tile i+1]
    x2_ref[:, :tm] = x_lo_ref[...]
    x2_ref[:, tm:] = x_hi_ref[...]

    acc = jnp.zeros(o_ref.shape, jnp.float32)
    # Unrolled accumulation over the kH*kW taps; offsets are static Python ints
    # so the shifted loads are scheduled under the matmuls.
    for idx, off in enumerate(offsets):
        xs = x2_ref[:, off:off + tm]                       # (C_in_p, tm), shifted window
        acc = acc + jnp.dot(w_ref[idx], xs,
                            preferred_element_type=jnp.float32)

    # conv(x, w * scale) + b  ==  scale * conv(x, w) + b   (scale/bias fused here)
    o_ref[...] = (acc * scale + b_ref[...]).astype(o_ref.dtype)


def equal_conv2d(x, weight, bias=None, *, stride=1, padding=0, groups=1,
                 compute_dtype=jnp.bfloat16):
    """EqualConv2d.forward: F.conv2d(x, weight * scale, bias, stride, padding).

    x:      (B, C_in, H, W)
    weight: (C_out, C_in // groups, kH, kW)
    bias:   (C_out,) or None
    """
    if groups != 1:
        # TODO(synk): grouped convolution (groups > 1) not implemented in this kernel.
        raise NotImplementedError("groups != 1 not supported")

    B, C_in, H, W = x.shape
    C_out, C_in_g, kH, kW = weight.shape
    scale = 1.0 / math.sqrt(C_in_g * kH * kW)
    out_dtype = x.dtype

    if padding > 0:
        x = jnp.pad(x, ((0, 0), (0, 0), (padding, padding), (padding, padding)))
    Hp, Wp = H + 2 * padding, W + 2 * padding
    Ho = (Hp - kH) // stride + 1
    Wo = (Wp - kW) // stride + 1

    # Sublane-aligned channel counts (16 for bf16 packing, 8 for f32).
    c_align = 16 if compute_dtype == jnp.bfloat16 else 8
    C_in_p = _round_up(C_in, c_align)
    C_out_p = _round_up(C_out, 8)
    kHW = kH * kW

    # Flat channel-major view: x_flat[c, b*Hp*Wp + hp*Wp + wp].  The kernel
    # computes the dense stride-1 "full" output over this padded grid; row-wrap
    # positions are garbage and are sliced off below (valid positions never
    # read across a batch boundary or into the zero tail).
    L = B * Hp * Wp
    x_flat = jnp.transpose(x, (1, 0, 2, 3)).reshape(C_in, L).astype(compute_dtype)
    if C_in_p != C_in:
        x_flat = jnp.pad(x_flat, ((0, C_in_p - C_in), (0, 0)))

    # Tap offsets along the flat spatial axis (static).
    offsets = tuple(kh * Wp + kw for kh in range(kH) for kw in range(kW))
    halo = offsets[-1]                                     # (kH-1)*Wp + (kW-1)

    # --- lane-tile selection: generation-safe VMEM budget, >= 2 grid steps ---
    tm_min = _round_up(max(halo, 128), 128)
    e_sz = jnp.dtype(compute_dtype).itemsize

    def vmem_estimate(tm):
        x_bufs = 2 * 2 * C_in_p * tm * e_sz                # two halo specs, double-buffered
        x2_scr = 2 * tm * C_in_p * e_sz                    # shifted-window scratch
        out_bufs = 2 * C_out_p * tm * 4                    # double-buffered output
        w_res = 2 * kHW * C_out_p * C_in_p * e_sz          # resident weight (x2 safety)
        return x_bufs + x2_scr + out_bufs + w_res

    VMEM_BUDGET = 20 * 1024 * 1024                         # headroom under v7x's 64 MiB
    tm = tm_min
    for cand in (256, 512, 1024, 2048, 4096):
        if cand > tm and vmem_estimate(cand) <= VMEM_BUDGET:
            tm = cand
    if L > tm_min:
        # Keep at least 2 tiles so the pipeline overlaps and v7x megacore is fed.
        tm = min(tm, max(tm_min, _round_up(pl.cdiv(L, 2), 128)))
    num_tiles = pl.cdiv(L, tm)

    # Pad the flat axis so the halo spec (block index i+1) is always in bounds.
    L_total = (num_tiles + 1) * tm
    x_flat = jnp.pad(x_flat, ((0, 0), (0, L_total - L)))

    # Weight as (kH*kW, C_out_p, C_in_p); bias as (C_out_p, 1) f32.
    w3 = jnp.transpose(weight, (2, 3, 0, 1)).reshape(kHW, C_out, C_in_g)
    w3 = jnp.pad(w3.astype(compute_dtype),
                 ((0, 0), (0, C_out_p - C_out), (0, C_in_p - C_in_g)))
    b_full = bias if bias is not None else jnp.zeros((C_out,), jnp.float32)
    b2 = jnp.pad(b_full.astype(jnp.float32).reshape(C_out, 1),
                 ((0, C_out_p - C_out), (0, 0)))

    M_out = num_tiles * tm
    cost = pl.CostEstimate(
        flops=int(2 * C_out_p * C_in_p * kHW * M_out),
        transcendentals=0,
        bytes_accessed=int(2 * C_in_p * M_out * e_sz
                           + kHW * C_out_p * C_in_p * e_sz
                           + C_out_p * 4
                           + C_out_p * M_out * 4),
    )

    out2d = pl.pallas_call(
        functools.partial(equal_conv2d_kernel, offsets=offsets, tm=tm, scale=scale),
        out_shape=jax.ShapeDtypeStruct((C_out_p, M_out), out_dtype),
        grid_spec=pltpu.PrefetchScalarGridSpec(
            num_scalar_prefetch=0,
            grid=(num_tiles,),
            in_specs=[
                pl.BlockSpec((kHW, C_out_p, C_in_p), lambda i: (0, 0, 0)),  # weight (resident)
                pl.BlockSpec((C_out_p, 1), lambda i: (0, 0)),               # bias (resident)
                pl.BlockSpec((C_in_p, tm), lambda i: (0, i)),               # x tile i
                pl.BlockSpec((C_in_p, tm), lambda i: (0, i + 1)),           # x tile i+1 (halo)
            ],
            out_specs=pl.BlockSpec((C_out_p, tm), lambda i: (0, i)),
            scratch_shapes=[pltpu.VMEM((C_in_p, 2 * tm), compute_dtype)],
        ),
        compiler_params=pltpu.CompilerParams(
            dimension_semantics=("parallel",),
            vmem_limit_bytes=32 * 1024 * 1024,
        ),
        cost_estimate=cost,
    )(w3, b2, x_flat, x_flat)

    # Epilogue: drop channel/lane padding, keep the valid (strided) positions,
    # restore NCHW.
    # TODO(synk): if the consumer accepts the channel-major (C_out, M) layout,
    # this slice/transpose pass over the output can be fused away.
    out_full = out2d[:C_out, :L].reshape(C_out, B, Hp, Wp)
    out = out_full[:, :, :(Ho - 1) * stride + 1:stride, :(Wo - 1) * stride + 1:stride]
    return jnp.transpose(out, (1, 0, 2, 3))


if __name__ == "__main__":
    key = jax.random.PRNGKey(0)
    k_w, k_b, k_x = jax.random.split(key, 3)

    # Module config: EqualConv2d(in_channel=4, out_channel=8, kernel_size=3,
    #                            stride=1, padding=1, bias=True)
    B, C_in, H, W = 2, 4, 16, 16
    C_out, ksize, stride, padding = 8, 3, 1, 1

    x = jax.random.normal(k_x, (B, C_in, H, W), dtype=jnp.float32)
    weight = jax.random.normal(k_w, (C_out, C_in, ksize, ksize), dtype=jnp.float32)
    bias = jax.random.normal(k_b, (C_out,), dtype=jnp.float32)

    out = equal_conv2d(x, weight, bias, stride=stride, padding=padding)
    out = jax.block_until_ready(out)

    # Reference: F.conv2d(x, weight * scale, bias, stride, padding) in full f32.
    scale = 1.0 / math.sqrt(C_in * ksize * ksize)
    ref = jax.lax.conv_general_dilated(
        x, weight * scale,
        window_strides=(stride, stride),
        padding=[(padding, padding), (padding, padding)],
        dimension_numbers=("NCHW", "OIHW", "NCHW"),
        precision=jax.lax.Precision.HIGHEST,
    ) + bias[None, :, None, None]

    assert out.shape == (B, C_out, H, W), out.shape
    # Kernel uses bf16 MXU inputs + f32 accumulation (per perf review); allow
    # bf16 input-rounding error vs. the f32 HIGHEST reference. Real bugs show
    # up as O(0.1..1) errors, so this still verifies correctness.
    max_err = float(jnp.max(jnp.abs(out - ref)))
    assert jnp.allclose(out, ref, atol=2e-2, rtol=2e-2), max_err

    print("KERNEL_OK")
</pallas_src>

<mosaic_0001>
module attributes {stable_mosaic.version = 11 : i64} {
  func.func @equal_conv2d_kernel(%arg0: i32, %arg1: memref<9x8x16xbf16, #tpu.memory_space<vmem>>, %arg2: memref<8x1xf32, #tpu.memory_space<vmem>>, %arg3: memref<16x384xbf16, #tpu.memory_space<vmem>>, %arg4: memref<16x384xbf16, #tpu.memory_space<vmem>>, %arg5: memref<8x384xf32, #tpu.memory_space<vmem>>, %arg6: memref<16x768xbf16, #tpu.memory_space<vmem>>) attributes {dimension_semantics = [#tpu.dimension_semantics<parallel>], iteration_bounds = array<i64: 2>, scalar_prefetch = 0 : i64, scratch_operands = 1 : i64, tpu.core_type = #tpu.core_type<tc>, window_params = [{pipeline_mode = #tpu.pipeline_mode<synchronous>, transform_indices = @transform_0, window_bounds = array<i64: 9, 8, 16>}, {pipeline_mode = #tpu.pipeline_mode<synchronous>, transform_indices = @transform_1, window_bounds = array<i64: 8, 1>}, {transform_indices = @transform_2, window_bounds = array<i64: 16, 384>}, {transform_indices = @transform_3, window_bounds = array<i64: 16, 384>}, {transform_indices = @transform_4, window_bounds = array<i64: 8, 384>}]} {
    %c0 = arith.constant 0 : index
    %c0_0 = arith.constant 0 : index
    %0 = vector.load %arg3[%c0, %c0_0] : memref<16x384xbf16, #tpu.memory_space<vmem>>, vector<16x384xbf16>
    %c0_1 = arith.constant 0 : index
    %c0_2 = arith.constant 0 : index
    %1 = vector.load %arg6[%c0_1, %c0_2] : memref<16x768xbf16, #tpu.memory_space<vmem>>, vector<16x384xbf16>
    tpu.vector_store %arg6[%c0_1, %c0_2], %0 {strides = array<i32>} : memref<16x768xbf16, #tpu.memory_space<vmem>>, vector<16x384xbf16>,
    %c0_3 = arith.constant 0 : index
    %c0_4 = arith.constant 0 : index
    %2 = vector.load %arg4[%c0_3, %c0_4] : memref<16x384xbf16, #tpu.memory_space<vmem>>, vector<16x384xbf16>
    %c0_5 = arith.constant 0 : index
    %c384 = arith.constant 384 : index
    %3 = vector.load %arg6[%c0_5, %c384] : memref<16x768xbf16, #tpu.memory_space<vmem>>, vector<16x384xbf16>
    tpu.vector_store %arg6[%c0_5, %c384], %2 {strides = array<i32>} : memref<16x768xbf16, #tpu.memory_space<vmem>>, vector<16x384xbf16>,
    %cst = arith.constant 0.000000e+00 : f32
    %4 = vector.broadcast %cst : f32 to vector<8x384xf32>
    %c0_6 = arith.constant 0 : index
    %c0_7 = arith.constant 0 : index
    %5 = vector.load %arg6[%c0_6, %c0_7] : memref<16x768xbf16, #tpu.memory_space<vmem>>, vector<16x384xbf16>
    %c0_8 = arith.constant 0 : index
    %c0_9 = arith.constant 0 : index
    %c0_10 = arith.constant 0 : index
    %6 = vector.load %arg1[%c0_8, %c0_9, %c0_10] : memref<9x8x16xbf16, #tpu.memory_space<vmem>>, vector<1x8x16xbf16>
    %7 = vector.shape_cast %6 : vector<1x8x16xbf16> to vector<8x16xbf16>
    %cst_11 = arith.constant dense<0.000000e+00> : vector<8x384xf32>
    %8 = tpu.matmul %7, %5, %cst_11 {dimension_numbers = #tpu.dot_dimension_numbers<[1], [0], [0], [1], [0, 0, 1, 1], [], []>} : vector<8x16xbf16>, vector<16x384xbf16>, vector<8x384xf32> -> vector<8x384xf32>
    %9 = arith.addf %4, %8 : vector<8x384xf32>
    %c0_12 = arith.constant 0 : index
    %c1 = arith.constant 1 : index
    %10 = vector.load %arg6[%c0_12, %c1] : memref<16x768xbf16, #tpu.memory_space<vmem>>, vector<16x384xbf16>
    %c1_13 = arith.constant 1 : index
    %c0_14 = arith.constant 0 : index
    %c0_15 = arith.constant 0 : index
    %11 = vector.load %arg1[%c1_13, %c0_14, %c0_15] : memref<9x8x16xbf16, #tpu.memory_space<vmem>>, vector<1x8x16xbf16>
    %12 = vector.shape_cast %11 : vector<1x8x16xbf16> to vector<8x16xbf16>
    %cst_16 = arith.constant dense<0.000000e+00> : vector<8x384xf32>
    %13 = tpu.matmul %12, %10, %cst_16 {dimension_numbers = #tpu.dot_dimension_numbers<[1], [0], [0], [1], [0, 0, 1, 1], [], []>} : vector<8x16xbf16>, vector<16x384xbf16>, vector<8x384xf32> -> vector<8x384xf32>
    %14 = arith.addf %9, %13 : vector<8x384xf32>
    %c0_17 = arith.constant 0 : index
    %c2 = arith.constant 2 : index
    %15 = vector.load %arg6[%c0_17, %c2] : memref<16x768xbf16, #tpu.memory_space<vmem>>, vector<16x384xbf16>
    %c2_18 = arith.constant 2 : index
    %c0_19 = arith.constant 0 : index
    %c0_20 = arith.constant 0 : index
    %16 = vector.load %arg1[%c2_18, %c0_19, %c0_20] : memref<9x8x16xbf16, #tpu.memory_space<vmem>>, vector<1x8x16xbf16>
    %17 = vector.shape_cast %16 : vector<1x8x16xbf16> to vector<8x16xbf16>
    %cst_21 = arith.constant dense<0.000000e+00> : vector<8x384xf32>
    %18 = tpu.matmul %17, %15, %cst_21 {dimension_numbers = #tpu.dot_dimension_numbers<[1], [0], [0], [1], [0, 0, 1, 1], [], []>} : vector<8x16xbf16>, vector<16x384xbf16>, vector<8x384xf32> -> vector<8x384xf32>
    %19 = arith.addf %14, %18 : vector<8x384xf32>
    %c0_22 = arith.constant 0 : index
    %c18 = arith.constant 18 : index
    %20 = vector.load %arg6[%c0_22, %c18] : memref<16x768xbf16, #tpu.memory_space<vmem>>, vector<16x384xbf16>
    %c3 = arith.constant 3 : index
    %c0_23 = arith.constant 0 : index
    %c0_24 = arith.constant 0 : index
    %21 = vector.load %arg1[%c3, %c0_23, %c0_24] : memref<9x8x16xbf16, #tpu.memory_space<vmem>>, vector<1x8x16xbf16>
    %22 = vector.shape_cast %21 : vector<1x8x16xbf16> to vector<8x16xbf16>
    %cst_25 = arith.constant dense<0.000000e+00> : vector<8x384xf32>
    %23 = tpu.matmul %22, %20, %cst_25 {dimension_numbers = #tpu.dot_dimension_numbers<[1], [0], [0], [1], [0, 0, 1, 1], [], []>} : vector<8x16xbf16>, vector<16x384xbf16>, vector<8x384xf32> -> vector<8x384xf32>
    %24 = arith.addf %19, %23 : vector<8x384xf32>
    %c0_26 = arith.constant 0 : index
    %c19 = arith.constant 19 : index
    %25 = vector.load %arg6[%c0_26, %c19] : memref<16x768xbf16, #tpu.memory_space<vmem>>, vector<16x384xbf16>
    %c4 = arith.constant 4 : index
    %c0_27 = arith.constant 0 : index
    %c0_28 = arith.constant 0 : index
    %26 = vector.load %arg1[%c4, %c0_27, %c0_28] : memref<9x8x16xbf16, #tpu.memory_space<vmem>>, vector<1x8x16xbf16>
    %27 = vector.shape_cast %26 : vector<1x8x16xbf16> to vector<8x16xbf16>
    %cst_29 = arith.constant dense<0.000000e+00> : vector<8x384xf32>
    %28 = tpu.matmul %27, %25, %cst_29 {dimension_numbers = #tpu.dot_dimension_numbers<[1], [0], [0], [1], [0, 0, 1, 1], [], []>} : vector<8x16xbf16>, vector<16x384xbf16>, vector<8x384xf32> -> vector<8x384xf32>
    %29 = arith.addf %24, %28 : vector<8x384xf32>
    %c0_30 = arith.constant 0 : index
    %c20 = arith.constant 20 : index
    %30 = vector.load %arg6[%c0_30, %c20] : memref<16x768xbf16, #tpu.memory_space<vmem>>, vector<16x384xbf16>
    %c5 = arith.constant 5 : index
    %c0_31 = arith.constant 0 : index
    %c0_32 = arith.constant 0 : index
    %31 = vector.load %arg1[%c5, %c0_31, %c0_32] : memref<9x8x16xbf16, #tpu.memory_space<vmem>>, vector<1x8x16xbf16>
    %32 = vector.shape_cast %31 : vector<1x8x16xbf16> to vector<8x16xbf16>
    %cst_33 = arith.constant dense<0.000000e+00> : vector<8x384xf32>
    %33 = tpu.matmul %32, %30, %cst_33 {dimension_numbers = #tpu.dot_dimension_numbers<[1], [0], [0], [1], [0, 0, 1, 1], [], []>} : vector<8x16xbf16>, vector<16x384xbf16>, vector<8x384xf32> -> vector<8x384xf32>
    %34 = arith.addf %29, %33 : vector<8x384xf32>
    %c0_34 = arith.constant 0 : index
    %c36 = arith.constant 36 : index
    %35 = vector.load %arg6[%c0_34, %c36] : memref<16x768xbf16, #tpu.memory_space<vmem>>, vector<16x384xbf16>
    %c6 = arith.constant 6 : index
    %c0_35 = arith.constant 0 : index
    %c0_36 = arith.constant 0 : index
    %36 = vector.load %arg1[%c6, %c0_35, %c0_36] : memref<9x8x16xbf16, #tpu.memory_space<vmem>>, vector<1x8x16xbf16>
    %37 = vector.shape_cast %36 : vector<1x8x16xbf16> to vector<8x16xbf16>
    %cst_37 = arith.constant dense<0.000000e+00> : vector<8x384xf32>
    %38 = tpu.matmul %37, %35, %cst_37 {dimension_numbers = #tpu.dot_dimension_numbers<[1], [0], [0], [1], [0, 0, 1, 1], [], []>} : vector<8x16xbf16>, vector<16x384xbf16>, vector<8x384xf32> -> vector<8x384xf32>
    %39 = arith.addf %34, %38 : vector<8x384xf32>
    %c0_38 = arith.constant 0 : index
    %c37 = arith.constant 37 : index
    %40 = vector.load %arg6[%c0_38, %c37] : memref<16x768xbf16, #tpu.memory_space<vmem>>, vector<16x384xbf16>
    %c7 = arith.constant 7 : index
    %c0_39 = arith.constant 0 : index
    %c0_40 = arith.constant 0 : index
    %41 = vector.load %arg1[%c7, %c0_39, %c0_40] : memref<9x8x16xbf16, #tpu.memory_space<vmem>>, vector<1x8x16xbf16>
    %42 = vector.shape_cast %41 : vector<1x8x16xbf16> to vector<8x16xbf16>
    %cst_41 = arith.constant dense<0.000000e+00> : vector<8x384xf32>
    %43 = tpu.matmul %42, %40, %cst_41 {dimension_numbers = #tpu.dot_dimension_numbers<[1], [0], [0], [1], [0, 0, 1, 1], [], []>} : vector<8x16xbf16>, vector<16x384xbf16>, vector<8x384xf32> -> vector<8x384xf32>
    %44 = arith.addf %39, %43 : vector<8x384xf32>
    %c0_42 = arith.constant 0 : index
    %c38 = arith.constant 38 : index
    %45 = vector.load %arg6[%c0_42, %c38] : memref<16x768xbf16, #tpu.memory_space<vmem>>, vector<16x384xbf16>
    %c8 = arith.constant 8 : index
    %c0_43 = arith.constant 0 : index
    %c0_44 = arith.constant 0 : index
    %46 = vector.load %arg1[%c8, %c0_43, %c0_44] : memref<9x8x16xbf16, #tpu.memory_space<vmem>>, vector<1x8x16xbf16>
    %47 = vector.shape_cast %46 : vector<1x8x16xbf16> to vector<8x16xbf16>
    %cst_45 = arith.constant dense<0.000000e+00> : vector<8x384xf32>
    %48 = tpu.matmul %47, %45, %cst_45 {dimension_numbers = #tpu.dot_dimension_numbers<[1], [0], [0], [1], [0, 0, 1, 1], [], []>} : vector<8x16xbf16>, vector<16x384xbf16>, vector<8x384xf32> -> vector<8x384xf32>
    %49 = arith.addf %44, %48 : vector<8x384xf32>
    %cst_46 = arith.constant 0.166666672 : f32
    %50 = vector.broadcast %cst_46 : f32 to vector<8x384xf32>
    %51 = arith.mulf %49, %50 : vector<8x384xf32>
    %c0_47 = arith.constant 0 : index
    %c0_48 = arith.constant 0 : index
    %52 = vector.load %arg2[%c0_47, %c0_48] : memref<8x1xf32, #tpu.memory_space<vmem>>, vector<8x1xf32>
    %53 = vector.broadcast %52 : vector<8x1xf32> to vector<8x384xf32>
    %54 = arith.addf %51, %53 : vector<8x384xf32>
    %c0_49 = arith.constant 0 : index
    %c0_50 = arith.constant 0 : index
    %55 = vector.load %arg5[%c0_49, %c0_50] : memref<8x384xf32, #tpu.memory_space<vmem>>, vector<8x384xf32>
    tpu.vector_store %arg5[%c0_49, %c0_50], %54 {strides = array<i32>} : memref<8x384xf32, #tpu.memory_space<vmem>>, vector<8x384xf32>,
    return
  }
  func.func @transform_0(%arg0: i32) -> (i32, i32, i32) {
    %c0_i32 = arith.constant 0 : i32
    %c0_i32_0 = arith.constant 0 : i32
    %c0_i32_1 = arith.constant 0 : i32
    %c0_i32_2 = arith.constant 0 : i32
    return %c0_i32, %c0_i32_0, %c0_i32_1 : i32, i32, i32
  }
  func.func @transform_1(%arg0: i32) -> (i32, i32) {
    %c0_i32 = arith.constant 0 : i32
    %c0_i32_0 = arith.constant 0 : i32
    %c0_i32_1 = arith.constant 0 : i32
    return %c0_i32, %c0_i32_0 : i32, i32
  }
  func.func @transform_2(%arg0: i32) -> (i32, i32) {
    %c0_i32 = arith.constant 0 : i32
    %c0_i32_0 = arith.constant 0 : i32
    return %c0_i32, %arg0 : i32, i32
  }
  func.func @transform_3(%arg0: i32) -> (i32, i32) {
    %c1_i32 = arith.constant 1 : i32
    %0 = arith.addi %arg0, %c1_i32 : i32
    %c0_i32 = arith.constant 0 : i32
    %c0_i32_0 = arith.constant 0 : i32
    return %c0_i32, %0 : i32, i32
  }
  func.func @transform_4(%arg0: i32) -> (i32, i32) {
    %c0_i32 = arith.constant 0 : i32
    %c0_i32_0 = arith.constant 0 : i32
    return %c0_i32, %arg0 : i32, i32
  }
}

</mosaic_0001>

<llo_original>
// kernel: tpu_custom_call.1
$region0: #{tpu_custom_call.1}
  #allocation0 [shape = 'u32[]', space=smem, size = 0x4, offset = 0x4, fixed_abs, tag = 'smem constant byte address 0x4 - core index']
  #allocation1 [shape = 'u32[144,128]{1,0:T(1,128)}', space=vmem, size = 0x12000, scoped, tag = 'internal scratch']
  #allocation2 [shape = 'bf16[16,768]{1,0:T(8,128)(2,1)}', space=vmem, size = 0x6000, scoped, tag = 'scratch operand']
  %s0 = inlined_call_operand.hbm [shape: bf16[9,8,16], index: 0, kind: input, shape index: {}]
  %s1 = inlined_call_operand.vmem [shape: f32[8,1], index: 1, kind: input, shape index: {}]
  %s2 = inlined_call_operand.hbm [shape: bf16[16,1152], index: 2, kind: input, shape index: {}]
  %s3 = inlined_call_operand.hbm [shape: bf16[16,1152], index: 3, kind: input, shape index: {}]
  %s4 = inlined_call_operand.hbm [shape: f32[8,768], index: 4, kind: output, shape index: {}]
  %s5 = sld [smem:[#allocation0]]
  $region61: #{tpu_custom_call.1} parent=0
    _
  %s7 = ssub.s32 1, %s5
  %s8 = scalar_select 0, %s7, %s5
  $region1: #{tpu_custom_call.1} parent=0
    #allocation3 [shape = 'u8[18432]{0}', space=vmem, size = 0x4800, scoped, tag = 'input window, operand 0, single buffered']
    #allocation4 [shape = 's32[2]{0}', space=sflag, size = 0x8, scoped, tag = 'scoped memory for tpu_custom_call.1']
    #allocation5 [shape = 's32[2]{0}', space=sflag, size = 0x8, scoped, tag = 'scoped memory for tpu_custom_call.1']
    #allocation6 [shape = 'u8[24576]{0}', space=vmem, size = 0x6000, scoped, tag = 'input window, operand 2']
    #allocation7 [shape = 's32[2]{0}', space=sflag, size = 0x8, scoped, tag = 'scoped memory for tpu_custom_call.1']
    #allocation8 [shape = 'u8[24576]{0}', space=vmem, size = 0x6000, scoped, tag = 'input window, operand 3']
    #allocation9 [shape = 'u8[24576]{0}', space=vmem, size = 0x6000, scoped, tag = 'output window, operand 0']
    %9 = vsyncpa [#allocation4], 0
    %10 = vsyncpa [#allocation7], 0
    %s11 = scalar_lea.sflag [#allocation7], 1
    %12 = vsyncpa %s11, 0
    %13 = vsyncpa [#allocation5], 0
    %s14 = scalar_lea.sflag [#allocation5], 1
    %15 = vsyncpa %s14, 0
    loop: start=0, step=1, limit=4
    $region2: #{tpu_custom_call.1} parent=1 // loop_pre_header
      _
    $region3: #{tpu_custom_call.1} parent=1 // loop_header
      %s17 = sphi 0, %s21
      %p18 = scmp.ge.s32.totalorder %s17, 4
      %s25 = sphi 0, %s25
      %s27 = sphi 0, %s25
      %s28 = sphi 0, %s27
      %s42 = sphi 0, %s28
      %s46 = sphi 0, %s46
      %s48 = sphi 0, %s46
      %s49 = sphi 0, %s48
      %s63 = sphi 0, %s49
      %s69 = sphi 0, %s71
      %s72 = sphi 0, %s69
      %s73 = sphi 0, %s72
      %s89 = sphi 0, %s73
      %s97 = sphi 0, %s99
      %s100 = sphi 0, %s97
      %s101 = sphi 0, %s100
      %s117 = sphi 0, %s101
      %s123 = sphi 0, %s125
      %s126 = sphi 0, %s123
      %s127 = sphi 0, %s126
      %s143 = sphi 0, %s127
    $region4: #{tpu_custom_call.1} parent=1 // loop_header_branch
      %20 = sbr.rel (%p18) target = $region8
    $region5: #{tpu_custom_call.1} parent=1 // loop_body
      %s22 = ssub.s32 %s17, 1
      %s23 = ssub.s32 %s17, 2
      %s24 = sadd.s32 %s17, 1
      %s26 = sadd.s32 %s25, 1
      %p29 = scmp.eq.s32.totalorder %s17, 1
      %p30 = scmp.ne.s32.totalorder %s25, %s27
      %p31 = scmp.eq.s32.totalorder %s17, 0
      %p32 = por %p30, %p31
      %p33 = scmp.ne.s32.totalorder %s25, %s27
      %p34 = scmp.eq.s32.totalorder %s22, 1
      %p35 = por %p33, %p34
      %p36 = scmp.ne.s32.totalorder %s27, %s28
      %p37 = scmp.eq.s32.totalorder %s22, 0
      %p38 = por %p36, %p37
      %p39 = scmp.ne.s32.totalorder %s27, %s28
      %p40 = scmp.eq.s32.totalorder %s23, 1
      %p41 = por %p39, %p40
      %p43 = scmp.ne.s32.totalorder %s28, %s42
      %p44 = scmp.eq.s32.totalorder %s23, 0
      %p45 = por %p43, %p44
      %s47 = sadd.s32 %s46, 1
      %p50 = scmp.eq.s32.totalorder %s17, 1
      %p51 = scmp.ne.s32.totalorder %s46, %s48
      %p52 = scmp.eq.s32.totalorder %s17, 0
      %p53 = por %p51, %p52
      %p54 = scmp.ne.s32.totalorder %s46, %s48
      %p55 = scmp.eq.s32.totalorder %s22, 1
      %p56 = por %p54, %p55
      %p57 = scmp.ne.s32.totalorder %s48, %s49
      %p58 = scmp.eq.s32.totalorder %s22, 0
      %p59 = por %p57, %p58
      %p60 = scmp.ne.s32.totalorder %s48, %s49
      %p61 = scmp.eq.s32.totalorder %s23, 1
      %p62 = por %p60, %p61
      %p64 = scmp.ne.s32.totalorder %s49, %s63
      %p65 = scmp.eq.s32.totalorder %s23, 0
      %p66 = por %p64, %p65
      %s67 = ssub.s32 %s17, %s24
      %p68 = scmp.eq.s32.totalorder %s67, 0
      %s70 = sadd.s32 %s69, 1
      %s71 = scalar_select %p68, %s69, %s70
      %p74 = pneg %p68
      %p75 = scmp.eq.s32.totalorder %s17, 1
      %p76 = por %p74, %p75
      %p77 = scmp.ne.s32.totalorder %s69, %s72
      %p78 = scmp.eq.s32.totalorder %s17, 0
      %p79 = por %p77, %p78
      %p80 = scmp.ne.s32.totalorder %s69, %s72
      %p81 = scmp.eq.s32.totalorder %s22, 1
      %p82 = por %p80, %p81
      %p83 = scmp.ne.s32.totalorder %s72, %s73
      %p84 = scmp.eq.s32.totalorder %s22, 0
      %p85 = por %p83, %p84
      %p86 = scmp.ne.s32.totalorder %s72, %s73
      %p87 = scmp.eq.s32.totalorder %s23, 1
      %p88 = por %p86, %p87
      %p90 = scmp.ne.s32.totalorder %s73, %s89
      %p91 = scmp.eq.s32.totalorder %s23, 0
      %p92 = por %p90, %p91
      %s93 = sadd.s32 %s17, 1
      %s94 = sadd.s32 %s24, 1
      %s95 = ssub.s32 %s93, %s94
      %p96 = scmp.eq.s32.totalorder %s95, 0
      %s98 = sadd.s32 %s97, 1
      %s99 = scalar_select %p96, %s97, %s98
      %p102 = pneg %p96
      %p103 = scmp.eq.s32.totalorder %s17, 1
      %p104 = por %p102, %p103
      %p105 = scmp.ne.s32.totalorder %s97, %s100
      %p106 = scmp.eq.s32.totalorder %s17, 0
      %p107 = por %p105, %p106
      %p108 = scmp.ne.s32.totalorder %s97, %s100
      %p109 = scmp.eq.s32.totalorder %s22, 1
      %p110 = por %p108, %p109
      %p111 = scmp.ne.s32.totalorder %s100, %s101
      %p112 = scmp.eq.s32.totalorder %s22, 0
      %p113 = por %p111, %p112
      %p114 = scmp.ne.s32.totalorder %s100, %s101
      %p115 = scmp.eq.s32.totalorder %s23, 1
      %p116 = por %p114, %p115
      %p118 = scmp.ne.s32.totalorder %s101, %s117
      %p119 = scmp.eq.s32.totalorder %s23, 0
      %p120 = por %p118, %p119
      %s121 = ssub.s32 %s17, %s24
      %p122 = scmp.eq.s32.totalorder %s121, 0
      %s124 = sadd.s32 %s123, 1
      %s125 = scalar_select %p122, %s123, %s124
      %p128 = pneg %p122
      %p129 = scmp.eq.s32.totalorder %s17, 1
      %p130 = por %p128, %p129
      %p131 = scmp.ne.s32.totalorder %s123, %s126
      %p132 = scmp.eq.s32.totalorder %s17, 0
      %p133 = por %p131, %p132
      %p134 = scmp.ne.s32.totalorder %s123, %s126
      %p135 = scmp.eq.s32.totalorder %s22, 1
      %p136 = por %p134, %p135
      %p137 = scmp.ne.s32.totalorder %s126, %s127
      %p138 = scmp.eq.s32.totalorder %s22, 0
      %p139 = por %p137, %p138
      %p140 = scmp.ne.s32.totalorder %s126, %s127
      %p141 = scmp.eq.s32.totalorder %s23, 1
      %p142 = por %p140, %p141
      %p144 = scmp.ne.s32.totalorder %s127, %s143
      %p145 = scmp.eq.s32.totalorder %s23, 0
      %p146 = por %p144, %p145
      %p147 = scmp.le.s32.totalorder 1, %s17
      %p148 = scmp.lt.s32.totalorder %s17, 3
      %p149 = pnand %p147, %p148
      %p150 = pneg %p149
      // Predicated region
      $region9: #{tpu_custom_call.1} parent=5 // pred_check
        _
      $region10: #{tpu_custom_call.1} parent=5 // pred_check_branch
        %152 = sbr.rel (%p149) target = $region12
      $region11: #{tpu_custom_call.1} parent=5 // pred_region
        %s153 = ssub.s32 %s17, 1
        // Predicated region
        $region13: #{tpu_custom_call.1} parent=11 // pred_check
          %p154 = pneg %p38
        $region14: #{tpu_custom_call.1} parent=11 // pred_check_branch
          %156 = sbr.rel (%p154) target = $region16
        $region15: #{tpu_custom_call.1} parent=11 // pred_region
          %s158 = ssub.s32 576, 576
          %159 = vsyncadd [#allocation4], %s158
          %s160 = sshll.u32 [#allocation3], 4
          %s161 = int_to_ptr.vmem [resolvable:$true] %s160
          %166 = dma.hbm_to_vmem [thread:$0]  %s0, 576, %s161, [#allocation4], 64, 64, 4
        $region16: #{tpu_custom_call.1} parent=11 // pred_fallthru
          _
        // Predicated region
        $region17: #{tpu_custom_call.1} parent=11 // pred_check
          %p167 = pneg %p59
        $region18: #{tpu_custom_call.1} parent=11 // pred_check_branch
          %169 = sbr.rel (%p167) target = $region20
        $region19: #{tpu_custom_call.1} parent=11 // pred_region
          _
        $region20: #{tpu_custom_call.1} parent=11 // pred_fallthru
          _
      $region12: #{tpu_custom_call.1} parent=5 // pred_fallthru
        _
      %p170 = scmp.lt.s32.totalorder %s17, 2
      // Predicated region
      $region21: #{tpu_custom_call.1} parent=5 // pred_check
        %p171 = pneg %p170
      $region22: #{tpu_custom_call.1} parent=5 // pred_check_branch
        %173 = sbr.rel (%p171) target = $region24
      $region23: #{tpu_custom_call.1} parent=5 // pred_region
        // Predicated region
        $region25: #{tpu_custom_call.1} parent=23 // pred_check
          %p174 = pneg %p79
        $region26: #{tpu_custom_call.1} parent=23 // pred_check_branch
          %176 = sbr.rel (%p174) target = $region28
        $region27: #{tpu_custom_call.1} parent=23 // pred_region
          %s177 = sand.u32 %s17, 1
          %s178 = scalar_lea.sflag [#allocation7], %s177
          %s179 = sand.u32 %s69, 1
          %s180 = smul.addr %s179, 24
          %s181 = scalar_lea.vmem [#allocation6], %s180
          %s182 = smul.u32 3, %s17
          %s184 = ssub.s32 384, 384
          %185 = vsyncadd %s178, %s184
          %s186 = smul.addr %s182, 64
          %s187 = scalar_lea.hbm %s2, %s186
          %s188 = sshll.u32 %s181, 4
          %s189 = int_to_ptr.vmem [resolvable:$true] %s188
          %194 = dma.hbm_to_vmem [thread:$0]  %s187, 384, %s189, %s178, 576, 192, 12
        $region28: #{tpu_custom_call.1} parent=23 // pred_fallthru
          _
        // Predicated region
        $region29: #{tpu_custom_call.1} parent=23 // pred_check
          %p195 = pneg %p107
        $region30: #{tpu_custom_call.1} parent=23 // pred_check_branch
          %197 = sbr.rel (%p195) target = $region32
        $region31: #{tpu_custom_call.1} parent=23 // pred_region
          %s198 = sand.u32 %s17, 1
          %s199 = scalar_lea.sflag [#allocation7], %s198
          %s200 = sand.u32 %s97, 1
          %s201 = smul.addr %s200, 24
          %s202 = scalar_lea.vmem [#allocation8], %s201
          %s203 = sadd.s32 %s17, 1
          %s204 = smul.u32 3, %s203
          %s206 = ssub.s32 384, 384
          %207 = vsyncadd %s199, %s206
          %s208 = smul.addr %s204, 64
          %s209 = scalar_lea.hbm %s3, %s208
          %s210 = sshll.u32 %s202, 4
          %s211 = int_to_ptr.vmem [resolvable:$true] %s210
          %216 = dma.hbm_to_vmem [thread:$0]  %s209, 384, %s211, %s199, 576, 192, 12
        $region32: #{tpu_custom_call.1} parent=23 // pred_fallthru
          _
      $region24: #{tpu_custom_call.1} parent=5 // pred_fallthru
        _
      %p217 = scmp.le.s32.totalorder 1, %s17
      %p218 = scmp.lt.s32.totalorder %s17, 3
      %p219 = pnand %p217, %p218
      %p220 = pneg %p219
      // Predicated region
      $region33: #{tpu_custom_call.1} parent=5 // pred_check
        _
      $region34: #{tpu_custom_call.1} parent=5 // pred_check_branch
        %222 = sbr.rel (%p219) target = $region36
      $region35: #{tpu_custom_call.1} parent=5 // pred_region
        %s223 = ssub.s32 %s17, 1
        // Predicated region
        $region37: #{tpu_custom_call.1} parent=35 // pred_check
          %p224 = pneg %p38
        $region38: #{tpu_custom_call.1} parent=35 // pred_check_branch
          %226 = sbr.rel (%p224) target = $region40
        $region39: #{tpu_custom_call.1} parent=35 // pred_region
          %227 = dma.done [#allocation4], 576
        $region40: #{tpu_custom_call.1} parent=35 // pred_fallthru
          _
        %s228 = sand.u32 %s22, 1
        %s229 = scalar_lea.sflag [#allocation7], %s228
        %s230 = sand.u32 %s72, 1
        %s231 = smul.addr %s230, 24
        %s232 = scalar_lea.vmem [#allocation6], %s231
        // Predicated region
        $region41: #{tpu_custom_call.1} parent=35 // pred_check
          %p233 = pneg %p85
        $region42: #{tpu_custom_call.1} parent=35 // pred_check_branch
          %235 = sbr.rel (%p233) target = $region44
        $region43: #{tpu_custom_call.1} parent=35 // pred_region
          %236 = dma.done %s229, 384
        $region44: #{tpu_custom_call.1} parent=35 // pred_fallthru
          _
        %s237 = sand.u32 %s22, 1
        %s238 = scalar_lea.sflag [#allocation7], %s237
        %s239 = sand.u32 %s100, 1
        %s240 = smul.addr %s239, 24
        %s241 = scalar_lea.vmem [#allocation8], %s240
        // Predicated region
        $region45: #{tpu_custom_call.1} parent=35 // pred_check
          %p242 = pneg %p113
        $region46: #{tpu_custom_call.1} parent=35 // pred_check_branch
          %244 = sbr.rel (%p242) target = $region48
        $region47: #{tpu_custom_call.1} parent=35 // pred_region
          %245 = dma.done %s238, 384
        $region48: #{tpu_custom_call.1} parent=35 // pred_fallthru
          _
        %p246 = pneg %p38
        %p247 = pneg %p35
        %p248 = pneg %p59
        %p249 = pneg %p56
        %s250 = sand.u32 %s22, 1
        %s251 = scalar_lea.sflag [#allocation7], %s250
        %s252 = sand.u32 %s72, 1
        %s253 = smul.addr %s252, 24
        %s254 = scalar_lea.vmem [#allocation6], %s253
        %p255 = pneg %p85
        %p256 = pneg %p82
        %s257 = sand.u32 %s22, 1
        %s258 = scalar_lea.sflag [#allocation7], %s257
        %s259 = sand.u32 %s100, 1
        %s260 = smul.addr %s259, 24
        %s261 = scalar_lea.vmem [#allocation8], %s260
        %p262 = pneg %p113
        %p263 = pneg %p110
        %p264 = pneg %p139
        %p265 = pneg %p136
        %s266 = sand.u32 %s126, 1
        %s267 = scalar_lea.sflag [#allocation5], %s266
        %s268 = sand.u32 %s126, 1
        %s269 = smul.addr %s268, 24
        %s270 = scalar_lea.vmem [#allocation9], %s269
        %s271 = smul.u32 3, %s22
        %s272 = sadd.s32 %s22, 1
        %s273 = smul.u32 3, %s272
        %s274 = smul.u32 3, %s22
        %v276 = vld [vmem:[%s232] sm:$0xff]
        %v277 = vld [vmem:[%s232 + $0x8] sm:$0xf]
        %v278 = vld [vmem:[%s232 + $0xc] sm:$0xff]
        %v279 = vld [vmem:[%s232 + $0x14] sm:$0xf]
        %280 = vst [vmem:[#allocation2] sm:$0xff] %v276
        %281 = vst [vmem:[#allocation2 + $0x8] sm:$0xf] %v277
        %282 = vst [vmem:[#allocation2 + $0x18] sm:$0xff] %v278
        %283 = vst [vmem:[#allocation2 + $0x20] sm:$0xf] %v279
        %v284 = vld [vmem:[%s241] sm:$0xff]
        %v285 = vld [vmem:[%s241 + $0x8] sm:$0xf]
        %v286 = vld [vmem:[%s241 + $0xc] sm:$0xff]
        %v287 = vld [vmem:[%s241 + $0x14] sm:$0xf]
        %288 = vst [vmem:[#allocation2 + $0xc] sm:$0xff] %v284
        %289 = vst [vmem:[#allocation2 + $0x14] sm:$0xf] %v285
        %290 = vst [vmem:[#allocation2 + $0x24] sm:$0xff] %v286
        %291 = vst [vmem:[#allocation2 + $0x2c] sm:$0xf] %v287
        %v292 = vld [vmem:[#allocation2] sm:$0xff]
        %v293 = vld [vmem:[#allocation2 + $0x8] sm:$0xf]
        %v294 = vld [vmem:[#allocation2 + $0x18] sm:$0xff]
        %v295 = vld [vmem:[#allocation2 + $0x20] sm:$0xf]
        %v296 = vld [vmem:[#allocation3] sm:$0xf]
        %v297 = vld [vmem:[#allocation2 + $0x8] sm:$0xff]
        %v298 = vld [vmem:[#allocation2 + $0x20] sm:$0xff]
        %s299 = scalar_lea.vmem [#allocation3], 4
        %v300 = vld [vmem:[%s299] sm:$0xf]
        %v305 = vunpack.c.l.b16 %v292
        %v306 = vunpack.c.h.b16 %v292
        %v307 = vunpack.c.l.b16 %v297
        %v308 = vunpack.c.h.b16 %v297
        %v309 = vunpack.c.l.b16 %v294
        %v310 = vunpack.c.h.b16 %v294
        %v311 = vunpack.c.l.b16 %v298
        %v312 = vunpack.c.h.b16 %v298
        %v313 = vpack.c.b16 %v309, %v305
        %v314 = vpack.c.b16 %v310, %v306
        %v315 = vpack.c.b16 %v311, %v307
        %v316 = vpack.c.b16 %v312, %v308
        %317 = vrot.lane.b32.xlu0 %v313, 127
        %v318 = vpop.permute.xlu0 %317
        %319 = vrot.lane.b32.xlu0 %v314, 127
        %v320 = vpop.permute.xlu0 %319
        %321 = vrot.lane.b32.xlu0 %v315, 127
        %v322 = vpop.permute.xlu0 %321
        %323 = vrot.lane.b32.xlu0 %v316, 127
        %v324 = vpop.permute.xlu0 %323
        %vm325 = vcmask 1039360
        %v326 = vsel %vm325, %v318, %v320
        %v327 = vsel %vm325, %v320, %v322
        %v328 = vsel %vm325, %v322, %v324
        %vm332 = vcmask 130048
        %v334 = vsel %vm332, %v300, 0
        %336 = vmatprep.subr.bf16.mxu0 0
        %337 = vmatpush1.bf16.msra.mxu0 0
        %338 = vmatprep.subr.bf16.mxu0 0
        %339 = vmatpush1.bf16.msra.mxu0 0
        %340 = vmatprep.subr.bf16.mxu0 0
        %341 = vmatpush1.bf16.msra.mxu0 0
        %342 = vmatprep.subr.bf16.mxu0 0
        %343 = vmatpush1.bf16.msra.mxu0 0
        %344 = vmatprep.subr.bf16.mxu0 0
        %345 = vmatpush1.bf16.msra.mxu0 0
        %346 = vmatprep.subr.bf16.mxu0 0
        %347 = vmatpush1.bf16.msra.mxu0 0
        %348 = vmatprep.subr.bf16.mxu0 0
        %349 = vmatpush1.bf16.msra.mxu0 0
        %350 = vmatprep.subr.bf16.mxu0 %v327
        %351 = vmatpush1.bf16.msra.mxu0 %v326
        %352 = vmatprep.subr.bf16.mxu0 0
        %353 = vmatpush2.bf16.msra.mxu0 0
        %354 = vmatprep.subr.bf16.mxu0 0
        %355 = vmatpush2.bf16.msra.mxu0 0
        %356 = vmatprep.subr.bf16.mxu0 0
        %357 = vmatpush2.bf16.msra.mxu0 0
        %358 = vmatprep.subr.bf16.mxu0 0
        %359 = vmatpush2.bf16.msra.mxu0 0
        %360 = vmatprep.subr.bf16.mxu0 0
        %361 = vmatpush2.bf16.msra.mxu0 0
        %362 = vmatprep.subr.bf16.mxu0 0
        %363 = vmatpush2.bf16.msra.mxu0 0
        %364 = vmatprep.subr.bf16.mxu0 0
        %365 = vmatpush2.bf16.msra.mxu0 0
        %366 = vmatprep.subr.bf16.mxu0 0
        %367 = vmatpush2.bf16.msra.mxu0 0
        %368 = vmatprep.mubr.bf16.mxu0 0
        %369 = vmatmul.mubr.bf16.gmra.mxu0 %v334
        %v370 = vpop.f32.mrf.mxu0
        %v371 = vadd.f32 0.0, %v370
        %v372 = vpop.f32.mrf.mxu0
        %v373 = vadd.f32 0.0, %v372
        %v374 = vpop.f32.mrf.mxu0
        %v375 = vpop.f32.mrf.mxu0
        %376 = vdwg.mxu0
        %377 = vmatprep.subr.bf16.mxu0 0
        %378 = vmatpush1.bf16.msra.mxu0 0
        %379 = vmatprep.subr.bf16.mxu0 0
        %380 = vmatpush1.bf16.msra.mxu0 0
        %381 = vmatprep.subr.bf16.mxu0 0
        %382 = vmatpush1.bf16.msra.mxu0 0
        %383 = vmatprep.subr.bf16.mxu0 0
        %384 = vmatpush1.bf16.msra.mxu0 0
        %385 = vmatprep.subr.bf16.mxu0 0
        %386 = vmatpush1.bf16.msra.mxu0 0
        %387 = vmatprep.subr.bf16.mxu0 0
        %388 = vmatpush1.bf16.msra.mxu0 0
        %389 = vmatprep.subr.bf16.mxu0 0
        %390 = vmatpush1.bf16.msra.mxu0 0
        %391 = vmatprep.subr.bf16.mxu0 0
        %392 = vmatpush1.bf16.msra.mxu0 %v328
        %393 = vmatprep.subr.bf16.mxu0 0
        %394 = vmatpush2.bf16.msra.mxu0 0
        %395 = vmatprep.subr.bf16.mxu0 0
        %396 = vmatpush2.bf16.msra.mxu0 0
        %397 = vmatprep.subr.bf16.mxu0 0
        %398 = vmatpush2.bf16.msra.mxu0 0
        %399 = vmatprep.subr.bf16.mxu0 0
        %400 = vmatpush2.bf16.msra.mxu0 0
        %401 = vmatprep.subr.bf16.mxu0 0
        %402 = vmatpush2.bf16.msra.mxu0 0
        %403 = vmatprep.subr.bf16.mxu0 0
        %404 = vmatpush2.bf16.msra.mxu0 0
        %405 = vmatprep.subr.bf16.mxu0 0
        %406 = vmatpush2.bf16.msra.mxu0 0
        %407 = vmatprep.subr.bf16.mxu0 0
        %408 = vmatpush2.bf16.msra.mxu0 0
        %409 = vmatprep.mubr.bf16.mxu0 0
        %410 = vmatmul.mubr.bf16.gmra.mxu0 %v334
        %v411 = vpop.f32.mrf.mxu0
        %v412 = vadd.f32 0.0, %v411
        %v413 = vpop.f32.mrf.mxu0
        %v414 = vpop.f32.mrf.mxu0
        %v415 = vpop.f32.mrf.mxu0
        %416 = vdwg.mxu0
        %v419 = vunpack.c.l.b16 %v293
        %v420 = vunpack.c.l.b16 %v295
        %v421 = vpack.c.b16 %v420, %v419
        %v426 = vsel %vm332, %v296, 0
        %428 = vmatprep.subr.bf16.mxu0 0
        %429 = vmatpush1.bf16.msra.mxu0 0
        %430 = vmatprep.subr.bf16.mxu0 0
        %431 = vmatpush1.bf16.msra.mxu0 0
        %432 = vmatprep.subr.bf16.mxu0 0
        %433 = vmatpush1.bf16.msra.mxu0 0
        %434 = vmatprep.subr.bf16.mxu0 0
        %435 = vmatpush1.bf16.msra.mxu0 0
        %436 = vmatprep.subr.bf16.mxu0 0
        %437 = vmatpush1.bf16.msra.mxu0 0
        %438 = vmatprep.subr.bf16.mxu0 0
        %439 = vmatpush1.bf16.msra.mxu0 0
        %440 = vmatprep.subr.bf16.mxu0 0
        %441 = vmatpush1.bf16.msra.mxu0 0
        %442 = vmatprep.subr.bf16.mxu0 %v314
        %443 = vmatpush1.bf16.msra.mxu0 %v313
        %444 = vmatprep.subr.bf16.mxu0 0
        %445 = vmatpush2.bf16.msra.mxu0 0
        %446 = vmatprep.subr.bf16.mxu0 0
        %447 = vmatpush2.bf16.msra.mxu0 0
        %448 = vmatprep.subr.bf16.mxu0 0
        %449 = vmatpush2.bf16.msra.mxu0 0
        %450 = vmatprep.subr.bf16.mxu0 0
        %451 = vmatpush2.bf16.msra.mxu0 0
        %452 = vmatprep.subr.bf16.mxu0 0
        %453 = vmatpush2.bf16.msra.mxu0 0
        %454 = vmatprep.subr.bf16.mxu0 0
        %455 = vmatpush2.bf16.msra.mxu0 0
        %456 = vmatprep.subr.bf16.mxu0 0
        %457 = vmatpush2.bf16.msra.mxu0 0
        %458 = vmatprep.subr.bf16.mxu0 0
        %459 = vmatpush2.bf16.msra.mxu0 0
        %460 = vmatprep.mubr.bf16.mxu0 0
        %461 = vmatmul.mubr.bf16.gmra.mxu0 %v426
        %v462 = vpop.f32.mrf.mxu0
        %v463 = vadd.f32 %v371, %v462
        %v464 = vpop.f32.mrf.mxu0
        %v465 = vadd.f32 %v373, %v464
        %v466 = vpop.f32.mrf.mxu0
        %v467 = vpop.f32.mrf.mxu0
        %468 = vdwg.mxu0
        %469 = vmatprep.subr.bf16.mxu0 0
        %470 = vmatpush1.bf16.msra.mxu0 0
        %471 = vmatprep.subr.bf16.mxu0 0
        %472 = vmatpush1.bf16.msra.mxu0 0
        %473 = vmatprep.subr.bf16.mxu0 0
        %474 = vmatpush1.bf16.msra.mxu0 0
        %475 = vmatprep.subr.bf16.mxu0 0
        %476 = vmatpush1.bf16.msra.mxu0 0
        %477 = vmatprep.subr.bf16.mxu0 0
        %478 = vmatpush1.bf16.msra.mxu0 0
        %479 = vmatprep.subr.bf16.mxu0 0
        %480 = vmatpush1.bf16.msra.mxu0 0
        %481 = vmatprep.subr.bf16.mxu0 0
        %482 = vmatpush1.bf16.msra.mxu0 0
        %483 = vmatprep.subr.bf16.mxu0 0
        %484 = vmatpush1.bf16.msra.mxu0 %v421
        %485 = vmatprep.subr.bf16.mxu0 0
        %486 = vmatpush2.bf16.msra.mxu0 0
        %487 = vmatprep.subr.bf16.mxu0 0
        %488 = vmatpush2.bf16.msra.mxu0 0
        %489 = vmatprep.subr.bf16.mxu0 0
        %490 = vmatpush2.bf16.msra.mxu0 0
        %491 = vmatprep.subr.bf16.mxu0 0
        %492 = vmatpush2.bf16.msra.mxu0 0
        %493 = vmatprep.subr.bf16.mxu0 0
        %494 = vmatpush2.bf16.msra.mxu0 0
        %495 = vmatprep.subr.bf16.mxu0 0
        %496 = vmatpush2.bf16.msra.mxu0 0
        %497 = vmatprep.subr.bf16.mxu0 0
        %498 = vmatpush2.bf16.msra.mxu0 0
        %499 = vmatprep.subr.bf16.mxu0 0
        %500 = vmatpush2.bf16.msra.mxu0 0
        %501 = vmatprep.mubr.bf16.mxu0 0
        %502 = vmatmul.mubr.bf16.gmra.mxu0 %v426
        %v503 = vpop.f32.mrf.mxu0
        %v504 = vadd.f32 %v412, %v503
        %v505 = vpop.f32.mrf.mxu0
        %v506 = vpop.f32.mrf.mxu0
        %v507 = vpop.f32.mrf.mxu0
        %508 = vdwg.mxu0
        %s509 = scalar_lea.vmem [#allocation3], 8
        %v510 = vld [vmem:[%s509] sm:$0xf]
        %511 = vrot.lane.b32.xlu0 %v313, 126
        %v512 = vpop.permute.xlu0 %511
        %513 = vrot.lane.b32.xlu0 %v314, 126
        %v514 = vpop.permute.xlu0 %513
        %515 = vrot.lane.b32.xlu0 %v315, 126
        %v516 = vpop.permute.xlu0 %515
        %517 = vrot.lane.b32.xlu0 %v316, 126
        %v518 = vpop.permute.xlu0 %517
        %vm519 = vcmask 1031168
        %v520 = vsel %vm519, %v512, %v514
        %v521 = vsel %vm519, %v514, %v516
        %v522 = vsel %vm519, %v516, %v518
        %v527 = vsel %vm332, %v510, 0
        %529 = vmatprep.subr.bf16.mxu0 0
        %530 = vmatpush1.bf16.msra.mxu0 0
        %531 = vmatprep.subr.bf16.mxu0 0
        %532 = vmatpush1.bf16.msra.mxu0 0
        %533 = vmatprep.subr.bf16.mxu0 0
        %534 = vmatpush1.bf16.msra.mxu0 0
        %535 = vmatprep.subr.bf16.mxu0 0
        %536 = vmatpush1.bf16.msra.mxu0 0
        %537 = vmatprep.subr.bf16.mxu0 0
        %538 = vmatpush1.bf16.msra.mxu0 0
        %539 = vmatprep.subr.bf16.mxu0 0
        %540 = vmatpush1.bf16.msra.mxu0 0
        %541 = vmatprep.subr.bf16.mxu0 0
        %542 = vmatpush1.bf16.msra.mxu0 0
        %543 = vmatprep.subr.bf16.mxu0 %v521
        %544 = vmatpush1.bf16.msra.mxu0 %v520
        %545 = vmatprep.subr.bf16.mxu0 0
        %546 = vmatpush2.bf16.msra.mxu0 0
        %547 = vmatprep.subr.bf16.mxu0 0
        %548 = vmatpush2.bf16.msra.mxu0 0
        %549 = vmatprep.subr.bf16.mxu0 0
        %550 = vmatpush2.bf16.msra.mxu0 0
        %551 = vmatprep.subr.bf16.mxu0 0
        %552 = vmatpush2.bf16.msra.mxu0 0
        %553 = vmatprep.subr.bf16.mxu0 0
        %554 = vmatpush2.bf16.msra.mxu0 0
        %555 = vmatprep.subr.bf16.mxu0 0
        %556 = vmatpush2.bf16.msra.mxu0 0
        %557 = vmatprep.subr.bf16.mxu0 0
        %558 = vmatpush2.bf16.msra.mxu0 0
        %559 = vmatprep.subr.bf16.mxu0 0
        %560 = vmatpush2.bf16.msra.mxu0 0
        %561 = vmatprep.mubr.bf16.mxu0 0
        %562 = vmatmul.mubr.bf16.gmra.mxu0 %v527
        %v563 = vpop.f32.mrf.mxu0
        %v564 = vadd.f32 0.0, %v563
        %v565 = vpop.f32.mrf.mxu0
        %v566 = vadd.f32 0.0, %v565
        %v567 = vpop.f32.mrf.mxu0
        %v568 = vpop.f32.mrf.mxu0
        %569 = vdwg.mxu0
        %570 = vmatprep.subr.bf16.mxu0 0
        %571 = vmatpush1.bf16.msra.mxu0 0
        %572 = vmatprep.subr.bf16.mxu0 0
        %573 = vmatpush1.bf16.msra.mxu0 0
        %574 = vmatprep.subr.bf16.mxu0 0
        %575 = vmatpush1.bf16.msra.mxu0 0
        %576 = vmatprep.subr.bf16.mxu0 0
        %577 = vmatpush1.bf16.msra.mxu0 0
        %578 = vmatprep.subr.bf16.mxu0 0
        %579 = vmatpush1.bf16.msra.mxu0 0
        %580 = vmatprep.subr.bf16.mxu0 0
        %581 = vmatpush1.bf16.msra.mxu0 0
        %582 = vmatprep.subr.bf16.mxu0 0
        %583 = vmatpush1.bf16.msra.mxu0 0
        %584 = vmatprep.subr.bf16.mxu0 0
        %585 = vmatpush1.bf16.msra.mxu0 %v522
        %586 = vmatprep.subr.bf16.mxu0 0
        %587 = vmatpush2.bf16.msra.mxu0 0
        %588 = vmatprep.subr.bf16.mxu0 0
        %589 = vmatpush2.bf16.msra.mxu0 0
        %590 = vmatprep.subr.bf16.mxu0 0
        %591 = vmatpush2.bf16.msra.mxu0 0
        %592 = vmatprep.subr.bf16.mxu0 0
        %593 = vmatpush2.bf16.msra.mxu0 0
        %594 = vmatprep.subr.bf16.mxu0 0
        %595 = vmatpush2.bf16.msra.mxu0 0
        %596 = vmatprep.subr.bf16.mxu0 0
        %597 = vmatpush2.bf16.msra.mxu0 0
        %598 = vmatprep.subr.bf16.mxu0 0
        %599 = vmatpush2.bf16.msra.mxu0 0
        %600 = vmatprep.subr.bf16.mxu0 0
        %601 = vmatpush2.bf16.msra.mxu0 0
        %602 = vmatprep.mubr.bf16.mxu0 0
        %603 = vmatmul.mubr.bf16.gmra.mxu0 %v527
        %v604 = vpop.f32.mrf.mxu0
        %v605 = vadd.f32 0.0, %v604
        %v606 = vpop.f32.mrf.mxu0
        %v607 = vpop.f32.mrf.mxu0
        %v608 = vpop.f32.mrf.mxu0
        %609 = vdwg.mxu0
        %v610 = vadd.f32 %v463, %v564
        %v611 = vadd.f32 %v465, %v566
        %v612 = vadd.f32 %v504, %v605
        %s613 = scalar_lea.vmem [#allocation3], 12
        %v614 = vld [vmem:[%s613] sm:$0xf]
        %615 = vrot.lane.b32.xlu0 %v313, 110
        %v616 = vpop.permute.xlu0 %615
        %617 = vrot.lane.b32.xlu0 %v314, 110
        %v618 = vpop.permute.xlu0 %617
        %619 = vrot.lane.b32.xlu0 %v315, 110
        %v620 = vpop.permute.xlu0 %619
        %621 = vrot.lane.b32.xlu0 %v316, 110
        %v622 = vpop.permute.xlu0 %621
        %vm623 = vcmask 900096
        %v624 = vsel %vm623, %v616, %v618
        %v625 = vsel %vm623, %v618, %v620
        %v626 = vsel %vm623, %v620, %v622
        %v631 = vsel %vm332, %v614, 0
        %633 = vmatprep.subr.bf16.mxu0 0
        %634 = vmatpush1.bf16.msra.mxu0 0
        %635 = vmatprep.subr.bf16.mxu0 0
        %636 = vmatpush1.bf16.msra.mxu0 0
        %637 = vmatprep.subr.bf16.mxu0 0
        %638 = vmatpush1.bf16.msra.mxu0 0
        %639 = vmatprep.subr.bf16.mxu0 0
        %640 = vmatpush1.bf16.msra.mxu0 0
        %641 = vmatprep.subr.bf16.mxu0 0
        %642 = vmatpush1.bf16.msra.mxu0 0
        %643 = vmatprep.subr.bf16.mxu0 0
        %644 = vmatpush1.bf16.msra.mxu0 0
        %645 = vmatprep.subr.bf16.mxu0 0
        %646 = vmatpush1.bf16.msra.mxu0 0
        %647 = vmatprep.subr.bf16.mxu0 %v625
        %648 = vmatpush1.bf16.msra.mxu0 %v624
        %649 = vmatprep.subr.bf16.mxu0 0
        %650 = vmatpush2.bf16.msra.mxu0 0
        %651 = vmatprep.subr.bf16.mxu0 0
        %652 = vmatpush2.bf16.msra.mxu0 0
        %653 = vmatprep.subr.bf16.mxu0 0
        %654 = vmatpush2.bf16.msra.mxu0 0
        %655 = vmatprep.subr.bf16.mxu0 0
        %656 = vmatpush2.bf16.msra.mxu0 0
        %657 = vmatprep.subr.bf16.mxu0 0
        %658 = vmatpush2.bf16.msra.mxu0 0
        %659 = vmatprep.subr.bf16.mxu0 0
        %660 = vmatpush2.bf16.msra.mxu0 0
        %661 = vmatprep.subr.bf16.mxu0 0
        %662 = vmatpush2.bf16.msra.mxu0 0
        %663 = vmatprep.subr.bf16.mxu0 0
        %664 = vmatpush2.bf16.msra.mxu0 0
        %665 = vmatprep.mubr.bf16.mxu0 0
        %666 = vmatmul.mubr.bf16.gmra.mxu0 %v631
        %v667 = vpop.f32.mrf.mxu0
        %v668 = vadd.f32 0.0, %v667
        %v669 = vpop.f32.mrf.mxu0
        %v670 = vadd.f32 0.0, %v669
        %v671 = vpop.f32.mrf.mxu0
        %v672 = vpop.f32.mrf.mxu0
        %673 = vdwg.mxu0
        %674 = vmatprep.subr.bf16.mxu0 0
        %675 = vmatpush1.bf16.msra.mxu0 0
        %676 = vmatprep.subr.bf16.mxu0 0
        %677 = vmatpush1.bf16.msra.mxu0 0
        %678 = vmatprep.subr.bf16.mxu0 0
        %679 = vmatpush1.bf16.msra.mxu0 0
        %680 = vmatprep.subr.bf16.mxu0 0
        %681 = vmatpush1.bf16.msra.mxu0 0
        %682 = vmatprep.subr.bf16.mxu0 0
        %683 = vmatpush1.bf16.msra.mxu0 0
        %684 = vmatprep.subr.bf16.mxu0 0
        %685 = vmatpush1.bf16.msra.mxu0 0
        %686 = vmatprep.subr.bf16.mxu0 0
        %687 = vmatpush1.bf16.msra.mxu0 0
        %688 = vmatprep.subr.bf16.mxu0 0
        %689 = vmatpush1.bf16.msra.mxu0 %v626
        %690 = vmatprep.subr.bf16.mxu0 0
        %691 = vmatpush2.bf16.msra.mxu0 0
        %692 = vmatprep.subr.bf16.mxu0 0
        %693 = vmatpush2.bf16.msra.mxu0 0
        %694 = vmatprep.subr.bf16.mxu0 0
        %695 = vmatpush2.bf16.msra.mxu0 0
        %696 = vmatprep.subr.bf16.mxu0 0
        %697 = vmatpush2.bf16.msra.mxu0 0
        %698 = vmatprep.subr.bf16.mxu0 0
        %699 = vmatpush2.bf16.msra.mxu0 0
        %700 = vmatprep.subr.bf16.mxu0 0
        %701 = vmatpush2.bf16.msra.mxu0 0
        %702 = vmatprep.subr.bf16.mxu0 0
        %703 = vmatpush2.bf16.msra.mxu0 0
        %704 = vmatprep.subr.bf16.mxu0 0
        %705 = vmatpush2.bf16.msra.mxu0 0
        %706 = vmatprep.mubr.bf16.mxu0 0
        %707 = vmatmul.mubr.bf16.gmra.mxu0 %v631
        %v708 = vpop.f32.mrf.mxu0
        %v709 = vadd.f32 0.0, %v708
        %v710 = vpop.f32.mrf.mxu0
        %v711 = vpop.f32.mrf.mxu0
        %v712 = vpop.f32.mrf.mxu0
        %713 = vdwg.mxu0
        %v714 = vadd.f32 %v610, %v668
        %v715 = vadd.f32 %v611, %v670
        %v716 = vadd.f32 %v612, %v709
        %s717 = scalar_lea.vmem [#allocation3], 16
        %v718 = vld [vmem:[%s717] sm:$0xf]
        %719 = vrot.lane.b32.xlu0 %v313, 109
        %v720 = vpop.permute.xlu0 %719
        %721 = vrot.lane.b32.xlu0 %v314, 109
        %v722 = vpop.permute.xlu0 %721
        %723 = vrot.lane.b32.xlu0 %v315, 109
        %v724 = vpop.permute.xlu0 %723
        %725 = vrot.lane.b32.xlu0 %v316, 109
        %v726 = vpop.permute.xlu0 %725
        %vm727 = vcmask 891904
        %v728 = vsel %vm727, %v720, %v722
        %v729 = vsel %vm727, %v722, %v724
        %v730 = vsel %vm727, %v724, %v726
        %v735 = vsel %vm332, %v718, 0
        %737 = vmatprep.subr.bf16.mxu0 0
        %738 = vmatpush1.bf16.msra.mxu0 0
        %739 = vmatprep.subr.bf16.mxu0 0
        %740 = vmatpush1.bf16.msra.mxu0 0
        %741 = vmatprep.subr.bf16.mxu0 0
        %742 = vmatpush1.bf16.msra.mxu0 0
        %743 = vmatprep.subr.bf16.mxu0 0
        %744 = vmatpush1.bf16.msra.mxu0 0
        %745 = vmatprep.subr.bf16.mxu0 0
        %746 = vmatpush1.bf16.msra.mxu0 0
        %747 = vmatprep.subr.bf16.mxu0 0
        %748 = vmatpush1.bf16.msra.mxu0 0
        %749 = vmatprep.subr.bf16.mxu0 0
        %750 = vmatpush1.bf16.msra.mxu0 0
        %751 = vmatprep.subr.bf16.mxu0 %v729
        %752 = vmatpush1.bf16.msra.mxu0 %v728
        %753 = vmatprep.subr.bf16.mxu0 0
        %754 = vmatpush2.bf16.msra.mxu0 0
        %755 = vmatprep.subr.bf16.mxu0 0
        %756 = vmatpush2.bf16.msra.mxu0 0
        %757 = vmatprep.subr.bf16.mxu0 0
        %758 = vmatpush2.bf16.msra.mxu0 0
        %759 = vmatprep.subr.bf16.mxu0 0
        %760 = vmatpush2.bf16.msra.mxu0 0
        %761 = vmatprep.subr.bf16.mxu0 0
        %762 = vmatpush2.bf16.msra.mxu0 0
        %763 = vmatprep.subr.bf16.mxu0 0
        %764 = vmatpush2.bf16.msra.mxu0 0
        %765 = vmatprep.subr.bf16.mxu0 0
        %766 = vmatpush2.bf16.msra.mxu0 0
        %767 = vmatprep.subr.bf16.mxu0 0
        %768 = vmatpush2.bf16.msra.mxu0 0
        %769 = vmatprep.mubr.bf16.mxu0 0
        %770 = vmatmul.mubr.bf16.gmra.mxu0 %v735
        %v771 = vpop.f32.mrf.mxu0
        %v772 = vadd.f32 0.0, %v771
        %v773 = vpop.f32.mrf.mxu0
        %v774 = vadd.f32 0.0, %v773
        %v775 = vpop.f32.mrf.mxu0
        %v776 = vpop.f32.mrf.mxu0
        %777 = vdwg.mxu0
        %778 = vmatprep.subr.bf16.mxu0 0
        %779 = vmatpush1.bf16.msra.mxu0 0
        %780 = vmatprep.subr.bf16.mxu0 0
        %781 = vmatpush1.bf16.msra.mxu0 0
        %782 = vmatprep.subr.bf16.mxu0 0
        %783 = vmatpush1.bf16.msra.mxu0 0
        %784 = vmatprep.subr.bf16.mxu0 0
        %785 = vmatpush1.bf16.msra.mxu0 0
        %786 = vmatprep.subr.bf16.mxu0 0
        %787 = vmatpush1.bf16.msra.mxu0 0
        %788 = vmatprep.subr.bf16.mxu0 0
        %789 = vmatpush1.bf16.msra.mxu0 0
        %790 = vmatprep.subr.bf16.mxu0 0
        %791 = vmatpush1.bf16.msra.mxu0 0
        %792 = vmatprep.subr.bf16.mxu0 0
        %793 = vmatpush1.bf16.msra.mxu0 %v730
        %794 = vmatprep.subr.bf16.mxu0 0
        %795 = vmatpush2.bf16.msra.mxu0 0
        %796 = vmatprep.subr.bf16.mxu0 0
        %797 = vmatpush2.bf16.msra.mxu0 0
        %798 = vmatprep.subr.bf16.mxu0 0
        %799 = vmatpush2.bf16.msra.mxu0 0
        %800 = vmatprep.subr.bf16.mxu0 0
        %801 = vmatpush2.bf16.msra.mxu0 0
        %802 = vmatprep.subr.bf16.mxu0 0
        %803 = vmatpush2.bf16.msra.mxu0 0
        %804 = vmatprep.subr.bf16.mxu0 0
        %805 = vmatpush2.bf16.msra.mxu0 0
        %806 = vmatprep.subr.bf16.mxu0 0
        %807 = vmatpush2.bf16.msra.mxu0 0
        %808 = vmatprep.subr.bf16.mxu0 0
        %809 = vmatpush2.bf16.msra.mxu0 0
        %810 = vmatprep.mubr.bf16.mxu0 0
        %811 = vmatmul.mubr.bf16.gmra.mxu0 %v735
        %v812 = vpop.f32.mrf.mxu0
        %v813 = vadd.f32 0.0, %v812
        %v814 = vpop.f32.mrf.mxu0
        %v815 = vpop.f32.mrf.mxu0
        %v816 = vpop.f32.mrf.mxu0
        %817 = vdwg.mxu0
        %v818 = vadd.f32 %v714, %v772
        %v819 = vadd.f32 %v715, %v774
        %v820 = vadd.f32 %v716, %v813
        %s821 = scalar_lea.vmem [#allocation3], 20
        %v822 = vld [vmem:[%s821] sm:$0xf]
        %823 = vrot.lane.b32.xlu0 %v313, 108
        %v824 = vpop.permute.xlu0 %823
        %825 = vrot.lane.b32.xlu0 %v314, 108
        %v826 = vpop.permute.xlu0 %825
        %827 = vrot.lane.b32.xlu0 %v315, 108
        %v828 = vpop.permute.xlu0 %827
        %829 = vrot.lane.b32.xlu0 %v316, 108
        %v830 = vpop.permute.xlu0 %829
        %vm831 = vcmask 883712
        %v832 = vsel %vm831, %v824, %v826
        %v833 = vsel %vm831, %v826, %v828
        %v834 = vsel %vm831, %v828, %v830
        %v839 = vsel %vm332, %v822, 0
        %841 = vmatprep.subr.bf16.mxu0 0
        %842 = vmatpush1.bf16.msra.mxu0 0
        %843 = vmatprep.subr.bf16.mxu0 0
        %844 = vmatpush1.bf16.msra.mxu0 0
        %845 = vmatprep.subr.bf16.mxu0 0
        %846 = vmatpush1.bf16.msra.mxu0 0
        %847 = vmatprep.subr.bf16.mxu0 0
        %848 = vmatpush1.bf16.msra.mxu0 0
        %849 = vmatprep.subr.bf16.mxu0 0
        %850 = vmatpush1.bf16.msra.mxu0 0
        %851 = vmatprep.subr.bf16.mxu0 0
        %852 = vmatpush1.bf16.msra.mxu0 0
        %853 = vmatprep.subr.bf16.mxu0 0
        %854 = vmatpush1.bf16.msra.mxu0 0
        %855 = vmatprep.subr.bf16.mxu0 %v833
        %856 = vmatpush1.bf16.msra.mxu0 %v832
        %857 = vmatprep.subr.bf16.mxu0 0
        %858 = vmatpush2.bf16.msra.mxu0 0
        %859 = vmatprep.subr.bf16.mxu0 0
        %860 = vmatpush2.bf16.msra.mxu0 0
        %861 = vmatprep.subr.bf16.mxu0 0
        %862 = vmatpush2.bf16.msra.mxu0 0
        %863 = vmatprep.subr.bf16.mxu0 0
        %864 = vmatpush2.bf16.msra.mxu0 0
        %865 = vmatprep.subr.bf16.mxu0 0
        %866 = vmatpush2.bf16.msra.mxu0 0
        %867 = vmatprep.subr.bf16.mxu0 0
        %868 = vmatpush2.bf16.msra.mxu0 0
        %869 = vmatprep.subr.bf16.mxu0 0
        %870 = vmatpush2.bf16.msra.mxu0 0
        %871 = vmatprep.subr.bf16.mxu0 0
        %872 = vmatpush2.bf16.msra.mxu0 0
        %873 = vmatprep.mubr.bf16.mxu0 0
        %874 = vmatmul.mubr.bf16.gmra.mxu0 %v839
        %v875 = vpop.f32.mrf.mxu0
        %v876 = vadd.f32 0.0, %v875
        %v877 = vpop.f32.mrf.mxu0
        %v878 = vadd.f32 0.0, %v877
        %v879 = vpop.f32.mrf.mxu0
        %v880 = vpop.f32.mrf.mxu0
        %881 = vdwg.mxu0
        %882 = vmatprep.subr.bf16.mxu0 0
        %883 = vmatpush1.bf16.msra.mxu0 0
        %884 = vmatprep.subr.bf16.mxu0 0
        %885 = vmatpush1.bf16.msra.mxu0 0
        %886 = vmatprep.subr.bf16.mxu0 0
        %887 = vmatpush1.bf16.msra.mxu0 0
        %888 = vmatprep.subr.bf16.mxu0 0
        %889 = vmatpush1.bf16.msra.mxu0 0
        %890 = vmatprep.subr.bf16.mxu0 0
        %891 = vmatpush1.bf16.msra.mxu0 0
        %892 = vmatprep.subr.bf16.mxu0 0
        %893 = vmatpush1.bf16.msra.mxu0 0
        %894 = vmatprep.subr.bf16.mxu0 0
        %895 = vmatpush1.bf16.msra.mxu0 0
        %896 = vmatprep.subr.bf16.mxu0 0
        %897 = vmatpush1.bf16.msra.mxu0 %v834
        %898 = vmatprep.subr.bf16.mxu0 0
        %899 = vmatpush2.bf16.msra.mxu0 0
        %900 = vmatprep.subr.bf16.mxu0 0
        %901 = vmatpush2.bf16.msra.mxu0 0
        %902 = vmatprep.subr.bf16.mxu0 0
        %903 = vmatpush2.bf16.msra.mxu0 0
        %904 = vmatprep.subr.bf16.mxu0 0
        %905 = vmatpush2.bf16.msra.mxu0 0
        %906 = vmatprep.subr.bf16.mxu0 0
        %907 = vmatpush2.bf16.msra.mxu0 0
        %908 = vmatprep.subr.bf16.mxu0 0
        %909 = vmatpush2.bf16.msra.mxu0 0
        %910 = vmatprep.subr.bf16.mxu0 0
        %911 = vmatpush2.bf16.msra.mxu0 0
        %912 = vmatprep.subr.bf16.mxu0 0
        %913 = vmatpush2.bf16.msra.mxu0 0
        %914 = vmatprep.mubr.bf16.mxu0 0
        %915 = vmatmul.mubr.bf16.gmra.mxu0 %v839
        %v916 = vpop.f32.mrf.mxu0
        %v917 = vadd.f32 0.0, %v916
        %v918 = vpop.f32.mrf.mxu0
        %v919 = vpop.f32.mrf.mxu0
        %v920 = vpop.f32.mrf.mxu0
        %921 = vdwg.mxu0
        %v922 = vadd.f32 %v818, %v876
        %v923 = vadd.f32 %v819, %v878
        %v924 = vadd.f32 %v820, %v917
        %s925 = scalar_lea.vmem [#allocation3], 24
        %v926 = vld [vmem:[%s925] sm:$0xf]
        %927 = vrot.lane.b32.xlu0 %v313, 92
        %v928 = vpop.permute.xlu0 %927
        %929 = vrot.lane.b32.xlu0 %v314, 92
        %v930 = vpop.permute.xlu0 %929
        %931 = vrot.lane.b32.xlu0 %v315, 92
        %v932 = vpop.permute.xlu0 %931
        %933 = vrot.lane.b32.xlu0 %v316, 92
        %v934 = vpop.permute.xlu0 %933
        %vm935 = vcmask 752640
        %v936 = vsel %vm935, %v928, %v930
        %v937 = vsel %vm935, %v930, %v932
        %v938 = vsel %vm935, %v932, %v934
        %v943 = vsel %vm332, %v926, 0
        %945 = vmatprep.subr.bf16.mxu0 0
        %946 = vmatpush1.bf16.msra.mxu0 0
        %947 = vmatprep.subr.bf16.mxu0 0
        %948 = vmatpush1.bf16.msra.mxu0 0
        %949 = vmatprep.subr.bf16.mxu0 0
        %950 = vmatpush1.bf16.msra.mxu0 0
        %951 = vmatprep.subr.bf16.mxu0 0
        %952 = vmatpush1.bf16.msra.mxu0 0
        %953 = vmatprep.subr.bf16.mxu0 0
        %954 = vmatpush1.bf16.msra.mxu0 0
        %955 = vmatprep.subr.bf16.mxu0 0
        %956 = vmatpush1.bf16.msra.mxu0 0
        %957 = vmatprep.subr.bf16.mxu0 0
        %958 = vmatpush1.bf16.msra.mxu0 0
        %959 = vmatprep.subr.bf16.mxu0 %v937
        %960 = vmatpush1.bf16.msra.mxu0 %v936
        %961 = vmatprep.subr.bf16.mxu0 0
        %962 = vmatpush2.bf16.msra.mxu0 0
        %963 = vmatprep.subr.bf16.mxu0 0
        %964 = vmatpush2.bf16.msra.mxu0 0
        %965 = vmatprep.subr.bf16.mxu0 0
        %966 = vmatpush2.bf16.msra.mxu0 0
        %967 = vmatprep.subr.bf16.mxu0 0
        %968 = vmatpush2.bf16.msra.mxu0 0
        %969 = vmatprep.subr.bf16.mxu0 0
        %970 = vmatpush2.bf16.msra.mxu0 0
        %971 = vmatprep.subr.bf16.mxu0 0
        %972 = vmatpush2.bf16.msra.mxu0 0
        %973 = vmatprep.subr.bf16.mxu0 0
        %974 = vmatpush2.bf16.msra.mxu0 0
        %975 = vmatprep.subr.bf16.mxu0 0
        %976 = vmatpush2.bf16.msra.mxu0 0
        %977 = vmatprep.mubr.bf16.mxu0 0
        %978 = vmatmul.mubr.bf16.gmra.mxu0 %v943
        %v979 = vpop.f32.mrf.mxu0
        %v980 = vadd.f32 0.0, %v979
        %v981 = vpop.f32.mrf.mxu0
        %v982 = vadd.f32 0.0, %v981
        %v983 = vpop.f32.mrf.mxu0
        %v984 = vpop.f32.mrf.mxu0
        %985 = vdwg.mxu0
        %986 = vmatprep.subr.bf16.mxu0 0
        %987 = vmatpush1.bf16.msra.mxu0 0
        %988 = vmatprep.subr.bf16.mxu0 0
        %989 = vmatpush1.bf16.msra.mxu0 0
        %990 = vmatprep.subr.bf16.mxu0 0
        %991 = vmatpush1.bf16.msra.mxu0 0
        %992 = vmatprep.subr.bf16.mxu0 0
        %993 = vmatpush1.bf16.msra.mxu0 0
        %994 = vmatprep.subr.bf16.mxu0 0
        %995 = vmatpush1.bf16.msra.mxu0 0
        %996 = vmatprep.subr.bf16.mxu0 0
        %997 = vmatpush1.bf16.msra.mxu0 0
        %998 = vmatprep.subr.bf16.mxu0 0
        %999 = vmatpush1.bf16.msra.mxu0 0
        %1000 = vmatprep.subr.bf16.mxu0 0
        %1001 = vmatpush1.bf16.msra.mxu0 %v938
        %1002 = vmatprep.subr.bf16.mxu0 0
        %1003 = vmatpush2.bf16.msra.mxu0 0
        %1004 = vmatprep.subr.bf16.mxu0 0
        %1005 = vmatpush2.bf16.msra.mxu0 0
        %1006 = vmatprep.subr.bf16.mxu0 0
        %1007 = vmatpush2.bf16.msra.mxu0 0
        %1008 = vmatprep.subr.bf16.mxu0 0
        %1009 = vmatpush2.bf16.msra.mxu0 0
        %1010 = vmatprep.subr.bf16.mxu0 0
        %1011 = vmatpush2.bf16.msra.mxu0 0
        %1012 = vmatprep.subr.bf16.mxu0 0
        %1013 = vmatpush2.bf16.msra.mxu0 0
        %1014 = vmatprep.subr.bf16.mxu0 0
        %1015 = vmatpush2.bf16.msra.mxu0 0
        %1016 = vmatprep.subr.bf16.mxu0 0
        %1017 = vmatpush2.bf16.msra.mxu0 0
        %1018 = vmatprep.mubr.bf16.mxu0 0
        %1019 = vmatmul.mubr.bf16.gmra.mxu0 %v943
        %v1020 = vpop.f32.mrf.mxu0
        %v1021 = vadd.f32 0.0, %v1020
        %v1022 = vpop.f32.mrf.mxu0
        %v1023 = vpop.f32.mrf.mxu0
        %v1024 = vpop.f32.mrf.mxu0
        %1025 = vdwg.mxu0
        %v1026 = vadd.f32 %v922, %v980
        %v1027 = vadd.f32 %v923, %v982
        %v1028 = vadd.f32 %v924, %v1021
        %s1029 = scalar_lea.vmem [#allocation3], 28
        %v1030 = vld [vmem:[%s1029] sm:$0xf]
        %1031 = vrot.lane.b32.xlu0 %v313, 91
        %v1032 = vpop.permute.xlu0 %1031
        %1033 = vrot.lane.b32.xlu0 %v314, 91
        %v1034 = vpop.permute.xlu0 %1033
        %1035 = vrot.lane.b32.xlu0 %v315, 91
        %v1036 = vpop.permute.xlu0 %1035
        %1037 = vrot.lane.b32.xlu0 %v316, 91
        %v1038 = vpop.permute.xlu0 %1037
        %vm1039 = vcmask 744448
        %v1040 = vsel %vm1039, %v1032, %v1034
        %v1041 = vsel %vm1039, %v1034, %v1036
        %v1042 = vsel %vm1039, %v1036, %v1038
        %v1047 = vsel %vm332, %v1030, 0
        %1049 = vmatprep.subr.bf16.mxu0 0
        %1050 = vmatpush1.bf16.msra.mxu0 0
        %1051 = vmatprep.subr.bf16.mxu0 0
        %1052 = vmatpush1.bf16.msra.mxu0 0
        %1053 = vmatprep.subr.bf16.mxu0 0
        %1054 = vmatpush1.bf16.msra.mxu0 0
        %1055 = vmatprep.subr.bf16.mxu0 0
        %1056 = vmatpush1.bf16.msra.mxu0 0
        %1057 = vmatprep.subr.bf16.mxu0 0
        %1058 = vmatpush1.bf16.msra.mxu0 0
        %1059 = vmatprep.subr.bf16.mxu0 0
        %1060 = vmatpush1.bf16.msra.mxu0 0
        %1061 = vmatprep.subr.bf16.mxu0 0
        %1062 = vmatpush1.bf16.msra.mxu0 0
        %1063 = vmatprep.subr.bf16.mxu0 %v1041
        %1064 = vmatpush1.bf16.msra.mxu0 %v1040
        %1065 = vmatprep.subr.bf16.mxu0 0
        %1066 = vmatpush2.bf16.msra.mxu0 0
        %1067 = vmatprep.subr.bf16.mxu0 0
        %1068 = vmatpush2.bf16.msra.mxu0 0
        %1069 = vmatprep.subr.bf16.mxu0 0
        %1070 = vmatpush2.bf16.msra.mxu0 0
        %1071 = vmatprep.subr.bf16.mxu0 0
        %1072 = vmatpush2.bf16.msra.mxu0 0
        %1073 = vmatprep.subr.bf16.mxu0 0
        %1074 = vmatpush2.bf16.msra.mxu0 0
        %1075 = vmatprep.subr.bf16.mxu0 0
        %1076 = vmatpush2.bf16.msra.mxu0 0
        %1077 = vmatprep.subr.bf16.mxu0 0
        %1078 = vmatpush2.bf16.msra.mxu0 0
        %1079 = vmatprep.subr.bf16.mxu0 0
        %1080 = vmatpush2.bf16.msra.mxu0 0
        %1081 = vmatprep.mubr.bf16.mxu0 0
        %1082 = vmatmul.mubr.bf16.gmra.mxu0 %v1047
        %v1083 = vpop.f32.mrf.mxu0
        %v1084 = vadd.f32 0.0, %v1083
        %v1085 = vpop.f32.mrf.mxu0
        %v1086 = vadd.f32 0.0, %v1085
        %v1087 = vpop.f32.mrf.mxu0
        %v1088 = vpop.f32.mrf.mxu0
        %1089 = vdwg.mxu0
        %1090 = vmatprep.subr.bf16.mxu0 0
        %1091 = vmatpush1.bf16.msra.mxu0 0
        %1092 = vmatprep.subr.bf16.mxu0 0
        %1093 = vmatpush1.bf16.msra.mxu0 0
        %1094 = vmatprep.subr.bf16.mxu0 0
        %1095 = vmatpush1.bf16.msra.mxu0 0
        %1096 = vmatprep.subr.bf16.mxu0 0
        %1097 = vmatpush1.bf16.msra.mxu0 0
        %1098 = vmatprep.subr.bf16.mxu0 0
        %1099 = vmatpush1.bf16.msra.mxu0 0
        %1100 = vmatprep.subr.bf16.mxu0 0
        %1101 = vmatpush1.bf16.msra.mxu0 0
        %1102 = vmatprep.subr.bf16.mxu0 0
        %1103 = vmatpush1.bf16.msra.mxu0 0
        %1104 = vmatprep.subr.bf16.mxu0 0
        %1105 = vmatpush1.bf16.msra.mxu0 %v1042
        %1106 = vmatprep.subr.bf16.mxu0 0
        %1107 = vmatpush2.bf16.msra.mxu0 0
        %1108 = vmatprep.subr.bf16.mxu0 0
        %1109 = vmatpush2.bf16.msra.mxu0 0
        %1110 = vmatprep.subr.bf16.mxu0 0
        %1111 = vmatpush2.bf16.msra.mxu0 0
        %1112 = vmatprep.subr.bf16.mxu0 0
        %1113 = vmatpush2.bf16.msra.mxu0 0
        %1114 = vmatprep.subr.bf16.mxu0 0
        %1115 = vmatpush2.bf16.msra.mxu0 0
        %1116 = vmatprep.subr.bf16.mxu0 0
        %1117 = vmatpush2.bf16.msra.mxu0 0
        %1118 = vmatprep.subr.bf16.mxu0 0
        %1119 = vmatpush2.bf16.msra.mxu0 0
        %1120 = vmatprep.subr.bf16.mxu0 0
        %1121 = vmatpush2.bf16.msra.mxu0 0
        %1122 = vmatprep.mubr.bf16.mxu0 0
        %1123 = vmatmul.mubr.bf16.gmra.mxu0 %v1047
        %v1124 = vpop.f32.mrf.mxu0
        %v1125 = vadd.f32 0.0, %v1124
        %v1126 = vpop.f32.mrf.mxu0
        %v1127 = vpop.f32.mrf.mxu0
        %v1128 = vpop.f32.mrf.mxu0
        %1129 = vdwg.mxu0
        %v1130 = vadd.f32 %v1026, %v1084
        %v1131 = vadd.f32 %v1027, %v1086
        %v1132 = vadd.f32 %v1028, %v1125
        %s1133 = scalar_lea.vmem [#allocation3], 32
        %v1134 = vld [vmem:[%s1133] sm:$0xf]
        %1135 = vrot.lane.b32.xlu0 %v313, 90
        %v1136 = vpop.permute.xlu0 %1135
        %1137 = vrot.lane.b32.xlu0 %v314, 90
        %v1138 = vpop.permute.xlu0 %1137
        %1139 = vrot.lane.b32.xlu0 %v315, 90
        %v1140 = vpop.permute.xlu0 %1139
        %1141 = vrot.lane.b32.xlu0 %v316, 90
        %v1142 = vpop.permute.xlu0 %1141
        %vm1143 = vcmask 736256
        %v1144 = vsel %vm1143, %v1136, %v1138
        %v1145 = vsel %vm1143, %v1138, %v1140
        %v1146 = vsel %vm1143, %v1140, %v1142
        %v1151 = vsel %vm332, %v1134, 0
        %1153 = vmatprep.subr.bf16.mxu0 0
        %1154 = vmatpush1.bf16.msra.mxu0 0
        %1155 = vmatprep.subr.bf16.mxu0 0
        %1156 = vmatpush1.bf16.msra.mxu0 0
        %1157 = vmatprep.subr.bf16.mxu0 0
        %1158 = vmatpush1.bf16.msra.mxu0 0
        %1159 = vmatprep.subr.bf16.mxu0 0
        %1160 = vmatpush1.bf16.msra.mxu0 0
        %1161 = vmatprep.subr.bf16.mxu0 0
        %1162 = vmatpush1.bf16.msra.mxu0 0
        %1163 = vmatprep.subr.bf16.mxu0 0
        %1164 = vmatpush1.bf16.msra.mxu0 0
        %1165 = vmatprep.subr.bf16.mxu0 0
        %1166 = vmatpush1.bf16.msra.mxu0 0
        %1167 = vmatprep.subr.bf16.mxu0 %v1145
        %1168 = vmatpush1.bf16.msra.mxu0 %v1144
        %1169 = vmatprep.subr.bf16.mxu0 0
        %1170 = vmatpush2.bf16.msra.mxu0 0
        %1171 = vmatprep.subr.bf16.mxu0 0
        %1172 = vmatpush2.bf16.msra.mxu0 0
        %1173 = vmatprep.subr.bf16.mxu0 0
        %1174 = vmatpush2.bf16.msra.mxu0 0
        %1175 = vmatprep.subr.bf16.mxu0 0
        %1176 = vmatpush2.bf16.msra.mxu0 0
        %1177 = vmatprep.subr.bf16.mxu0 0
        %1178 = vmatpush2.bf16.msra.mxu0 0
        %1179 = vmatprep.subr.bf16.mxu0 0
        %1180 = vmatpush2.bf16.msra.mxu0 0
        %1181 = vmatprep.subr.bf16.mxu0 0
        %1182 = vmatpush2.bf16.msra.mxu0 0
        %1183 = vmatprep.subr.bf16.mxu0 0
        %1184 = vmatpush2.bf16.msra.mxu0 0
        %1185 = vmatprep.mubr.bf16.mxu0 0
        %1186 = vmatmul.mubr.bf16.gmra.mxu0 %v1151
        %v1187 = vpop.f32.mrf.mxu0
        %v1188 = vadd.f32 0.0, %v1187
        %v1189 = vpop.f32.mrf.mxu0
        %v1190 = vadd.f32 0.0, %v1189
        %v1191 = vpop.f32.mrf.mxu0
        %v1192 = vpop.f32.mrf.mxu0
        %1193 = vdwg.mxu0
        %1194 = vmatprep.subr.bf16.mxu0 0
        %1195 = vmatpush1.bf16.msra.mxu0 0
        %1196 = vmatprep.subr.bf16.mxu0 0
        %1197 = vmatpush1.bf16.msra.mxu0 0
        %1198 = vmatprep.subr.bf16.mxu0 0
        %1199 = vmatpush1.bf16.msra.mxu0 0
        %1200 = vmatprep.subr.bf16.mxu0 0
        %1201 = vmatpush1.bf16.msra.mxu0 0
        %1202 = vmatprep.subr.bf16.mxu0 0
        %1203 = vmatpush1.bf16.msra.mxu0 0
        %1204 = vmatprep.subr.bf16.mxu0 0
        %1205 = vmatpush1.bf16.msra.mxu0 0
        %1206 = vmatprep.subr.bf16.mxu0 0
        %1207 = vmatpush1.bf16.msra.mxu0 0
        %1208 = vmatprep.subr.bf16.mxu0 0
        %1209 = vmatpush1.bf16.msra.mxu0 %v1146
        %1210 = vmatprep.subr.bf16.mxu0 0
        %1211 = vmatpush2.bf16.msra.mxu0 0
        %1212 = vmatprep.subr.bf16.mxu0 0
        %1213 = vmatpush2.bf16.msra.mxu0 0
        %1214 = vmatprep.subr.bf16.mxu0 0
        %1215 = vmatpush2.bf16.msra.mxu0 0
        %1216 = vmatprep.subr.bf16.mxu0 0
        %1217 = vmatpush2.bf16.msra.mxu0 0
        %1218 = vmatprep.subr.bf16.mxu0 0
        %1219 = vmatpush2.bf16.msra.mxu0 0
        %1220 = vmatprep.subr.bf16.mxu0 0
        %1221 = vmatpush2.bf16.msra.mxu0 0
        %1222 = vmatprep.subr.bf16.mxu0 0
        %1223 = vmatpush2.bf16.msra.mxu0 0
        %1224 = vmatprep.subr.bf16.mxu0 0
        %1225 = vmatpush2.bf16.msra.mxu0 0
        %1226 = vmatprep.mubr.bf16.mxu0 0
        %1227 = vmatmul.mubr.bf16.gmra.mxu0 %v1151
        %v1228 = vpop.f32.mrf.mxu0
        %v1229 = vadd.f32 0.0, %v1228
        %v1230 = vpop.f32.mrf.mxu0
        %v1231 = vpop.f32.mrf.mxu0
        %v1232 = vpop.f32.mrf.mxu0
        %1233 = vdwg.mxu0
        %v1234 = vadd.f32 %v1130, %v1188
        %v1235 = vadd.f32 %v1131, %v1190
        %v1236 = vadd.f32 %v1132, %v1229
        %v1237 = vmul.f32 %v1234, 0.16666667
        %v1238 = vmul.f32 %v1235, 0.16666667
        %v1239 = vmul.f32 %v1236, 0.16666667
        %v1240 = vld [vmem:[%s1] sm:$0xff]
        %1242 = vset.pattern.permute.xlu0 0
        %1243 = vperm.xlu0 %1242, %v1240
        %v1244 = vpop.permute.xlu0 %1243
        %v1246 = vadd.f32 %v1237, %v1244
        %v1247 = vadd.f32 %v1238, %v1244
        %v1248 = vadd.f32 %v1239, %v1244
        %1249 = vst [vmem:[%s270] sm:$0xff] %v1246
        %1250 = vst [vmem:[%s270 + $0x8] sm:$0xff] %v1247
        %1251 = vst [vmem:[%s270 + $0x10] sm:$0xff] %v1248
        %s1252 = sand.u32 %s126, 1
        %s1253 = scalar_lea.sflag [#allocation5], %s1252
        %s1254 = sand.u32 %s126, 1
        %s1255 = smul.addr %s1254, 24
        %s1256 = scalar_lea.vmem [#allocation9], %s1255
        // Predicated region
        $region49: #{tpu_custom_call.1} parent=35 // pred_check
          %p1257 = pneg %p136
        $region50: #{tpu_custom_call.1} parent=35 // pred_check_branch
          %1259 = sbr.rel (%p1257) target = $region52
        $region51: #{tpu_custom_call.1} parent=35 // pred_region
          %s1260 = smul.u32 3, %s22
          %s1262 = ssub.s32 384, 384
          %1263 = vsyncadd %s1253, %s1262
          %s1264 = smul.addr %s1260, 128
          %s1265 = scalar_lea.hbm %s4, %s1264
          %s1267 = sshll.u32 %s1256, 4
          %s1268 = int_to_ptr.vmem [resolvable:$true] %s1267
          %1270 = dma.vmem_to_hbm [thread:$0]  %s1268, 384, %s1265, %s1253
        $region52: #{tpu_custom_call.1} parent=35 // pred_fallthru
          _
      $region36: #{tpu_custom_call.1} parent=5 // pred_fallthru
        _
      %p1271 = scmp.le.s32.totalorder 2, %s17
      // Predicated region
      $region53: #{tpu_custom_call.1} parent=5 // pred_check
        %p1272 = pneg %p1271
      $region54: #{tpu_custom_call.1} parent=5 // pred_check_branch
        %1274 = sbr.rel (%p1272) target = $region56
      $region55: #{tpu_custom_call.1} parent=5 // pred_region
        %s1275 = ssub.s32 %s17, 2
        // Predicated region
        $region57: #{tpu_custom_call.1} parent=55 // pred_check
          %p1276 = pneg %p142
        $region58: #{tpu_custom_call.1} parent=55 // pred_check_branch
          %1278 = sbr.rel (%p1276) target = $region60
        $region59: #{tpu_custom_call.1} parent=55 // pred_region
          %s1279 = sand.u32 %s127, 1
          %s1280 = scalar_lea.sflag [#allocation5], %s1279
          %s1281 = sand.u32 %s127, 1
          %s1282 = smul.addr %s1281, 24
          %s1283 = scalar_lea.vmem [#allocation9], %s1282
          %1284 = dma.done %s1280, 384
        $region60: #{tpu_custom_call.1} parent=55 // pred_fallthru
          _
      $region56: #{tpu_custom_call.1} parent=5 // pred_fallthru
        _
    $region6: #{tpu_custom_call.1} parent=1 // loop_footer
      %s21 = sadd.s32 1, %s17
    $region7: #{tpu_custom_call.1} parent=1 // loop_footer_branch
      %16 = sbr.rel target = $region3
    $region8: #{tpu_custom_call.1} parent=1 // loop_exit
      _
    %1285 = vsyncpa [#allocation4], 1
    %s1286 = scalar_lea.sflag [#allocation4], 1
    %1287 = vsyncpa %s1286, 1
    %1288 = vsyncpa [#allocation7], 1
    %s1289 = scalar_lea.sflag [#allocation7], 1
    %1290 = vsyncpa %s1289, 1
    %1291 = vsyncpa [#allocation5], 1
    %s1292 = scalar_lea.sflag [#allocation5], 1
    %1293 = vsyncpa %s1292, 1

</llo_original>
